<compile_context>
chip_gen: v7x
topology: tpu7x:2x2x1
jax: 0.10.0
libtpu: 0.0.40
codegen_flags: <defaults>
</compile_context>

<pallas_src>
import functools

import jax
import jax.numpy as jnp
from jax.experimental import pallas as pl
from jax.experimental.pallas import tpu as pltpu


def _pick_tile(dim, target):
    """Largest power-of-two-ish tile <= target that divides dim (or full dim)."""
    if dim <= target:
        return dim
    t = target
    while t > 1 and dim % t != 0:
        t //= 2
    return t if dim % t == 0 else dim


@functools.lru_cache(maxsize=None)
def _vmem_limit_bytes():
    """~3/4 of physical VMEM, capped at 96 MiB (v5e/v6e ~96 MiB, v7x ~48 MiB)."""
    try:
        cap = int(pltpu.get_tpu_info().vmem_capacity_bytes)
        return int(min(96 * 1024 * 1024, (cap * 3) // 4))
    except Exception:
        return 64 * 1024 * 1024


@functools.lru_cache(maxsize=None)
def _buffered_one_supported():
    """Probe whether pipeline_mode=pl.Buffered(1) lowers & runs on this stack."""
    try:
        def k(x_ref, c_ref, o_ref):
            o_ref[...] = x_ref[...] + c_ref[...]

        x = jnp.arange(16 * 128, dtype=jnp.float32).reshape(16, 128)
        c = jnp.ones((8, 128), jnp.float32)
        out = pl.pallas_call(
            k,
            out_shape=jax.ShapeDtypeStruct((16, 128), jnp.float32),
            grid=(2,),
            in_specs=[
                pl.BlockSpec((8, 128), lambda i: (i, 0)),
                pl.BlockSpec((8, 128), lambda i: (0, 0),
                             pipeline_mode=pl.Buffered(1)),
            ],
            out_specs=pl.BlockSpec((8, 128), lambda i: (i, 0)),
        )(x, c)
        out = jax.block_until_ready(out)
        return bool(jnp.all(out == x + 1.0))
    except Exception:
        return False


def _const_spec(block_shape, index_map):
    """BlockSpec for grid-invariant operands (weights/biases/LN params).

    Single-buffered when supported — default double-buffering wastes 2x VMEM on
    blocks whose index_map never changes (critical headroom on v7x's 64 MiB)."""
    if _buffered_one_supported():
        return pl.BlockSpec(block_shape, index_map, pipeline_mode=pl.Buffered(1))
    return pl.BlockSpec(block_shape, index_map)


# -----------------------------------------------------------------------------
# Frontend: tiled matmul + bias (bf16 MXU operands, f32 accumulator scratch)
# -----------------------------------------------------------------------------
def _matmul_bias_kernel(a_ref, w_ref, b_ref, o_ref, acc_ref):
    @pl.when(pl.program_id(2) == 0)
    def _():
        acc_ref[...] = jnp.zeros_like(acc_ref)

    acc_ref[...] += jnp.dot(a_ref[...], w_ref[...],
                            preferred_element_type=jnp.float32)

    @pl.when(pl.program_id(2) == pl.num_programs(2) - 1)
    def _():
        o_ref[...] = (acc_ref[...] + b_ref[...]).astype(o_ref.dtype)


def pallas_matmul_bias(a, w, b, *, tm=512, tn=512, tk=512):
    """a: (M, K) bf16, w: (K, N) bf16, b: (1, N) f32 -> (M, N) f32."""
    M, K = a.shape
    K2, N = w.shape
    assert K == K2
    tm, tn, tk = _pick_tile(M, tm), _pick_tile(N, tn), _pick_tile(K, tk)
    return pl.pallas_call(
        _matmul_bias_kernel,
        out_shape=jax.ShapeDtypeStruct((M, N), jnp.float32),
        grid=(M // tm, N // tn, K // tk),
        in_specs=[
            pl.BlockSpec((tm, tk), lambda i, j, k: (i, k)),
            pl.BlockSpec((tk, tn), lambda i, j, k: (k, j)),
            pl.BlockSpec((1, tn), lambda i, j, k: (0, j)),
        ],
        out_specs=pl.BlockSpec((tm, tn), lambda i, j, k: (i, j)),
        scratch_shapes=[pltpu.VMEM((tm, tn), jnp.float32)],
        compiler_params=pltpu.CompilerParams(
            dimension_semantics=("parallel", "parallel", "arbitrary"),
            vmem_limit_bytes=_vmem_limit_bytes()),
    )(a, w, b)


# -----------------------------------------------------------------------------
# Stage A of attention: fused LayerNorm + QKV projection, bf16 output
# -----------------------------------------------------------------------------
def _ln_matmul_kernel(x_ref, g_ref, b_ref, w_ref, bias_ref, o_ref):
    x = x_ref[...]                                    # (tm, D) f32
    mu = jnp.mean(x, axis=-1, keepdims=True)
    xc = x - mu
    var = jnp.mean(xc * xc, axis=-1, keepdims=True)
    h = (xc * jax.lax.rsqrt(var + 1e-5)) * g_ref[...] + b_ref[...]
    y = jnp.dot(h.astype(jnp.bfloat16), w_ref[...],
                preferred_element_type=jnp.float32) + bias_ref[...]
    o_ref[...] = y.astype(o_ref.dtype)                # cast to bf16 immediately


def pallas_ln_matmul(x, gamma, beta, w, bias, *, tm=512):
    """x: (M, D) f32 -> LayerNorm -> x @ w + bias, returned in bf16."""
    M, D = x.shape
    N = w.shape[1]
    tm = _pick_tile(M, tm)
    return pl.pallas_call(
        _ln_matmul_kernel,
        out_shape=jax.ShapeDtypeStruct((M, N), jnp.bfloat16),
        grid=(M // tm,),
        in_specs=[
            pl.BlockSpec((tm, D), lambda i: (i, 0)),
            _const_spec((1, D), lambda i: (0, 0)),
            _const_spec((1, D), lambda i: (0, 0)),
            _const_spec((D, N), lambda i: (0, 0)),
            _const_spec((1, N), lambda i: (0, 0)),
        ],
        out_specs=pl.BlockSpec((tm, N), lambda i: (i, 0)),
        compiler_params=pltpu.CompilerParams(
            dimension_semantics=("parallel",),
            vmem_limit_bytes=_vmem_limit_bytes()),
    )(x, gamma, beta, w, bias)


# -----------------------------------------------------------------------------
# Stage B of attention: per-(batch, head) flash-style attention + per-head
# out-projection accumulation + residual, grid=(B, heads)
# -----------------------------------------------------------------------------
def _attn_head_kernel(lens_ref, x_ref, q_ref, k_ref, v_ref, wo_ref, bo_ref,
                      o_ref, *, kv_tile, num_kv, scale):
    b = pl.program_id(0)
    h = pl.program_id(1)
    n_valid = lens_ref[b]                       # valid key frames for this batch
    T, dh = q_ref.shape[2], q_ref.shape[3]

    @pl.when(h == 0)
    def _():
        # Residual stream + out-projection bias, added exactly once per batch.
        o_ref[0] = x_ref[0] + bo_ref[...]

    q = (q_ref[0, 0].astype(jnp.float32) * scale).astype(jnp.bfloat16)   # (T, dh)

    def body(step, carry):
        m_prev, l_prev, acc_prev = carry
        start = pl.multiple_of(step * kv_tile, kv_tile)
        k_t = k_ref[0, 0, pl.ds(start, kv_tile), :]          # (kt, dh) bf16
        v_t = v_ref[0, 0, pl.ds(start, kv_tile), :]
        s = jnp.dot(q, k_t.T, preferred_element_type=jnp.float32)   # (T, kt) f32
        # Length mask generated in-kernel from SMEM-prefetched lengths.
        col = start + jax.lax.broadcasted_iota(jnp.int32, (1, kv_tile), 1)
        s = s + jnp.where(col < n_valid, 0.0, -1e9)

        m_new = jnp.maximum(m_prev, jnp.max(s, axis=-1, keepdims=True))
        alpha = jnp.exp(m_prev - m_new)
        p = jnp.exp(s - m_new)
        l_new = alpha * l_prev + jnp.sum(p, axis=-1, keepdims=True)
        acc_new = alpha * acc_prev + jnp.dot(
            p.astype(jnp.bfloat16), v_t, preferred_element_type=jnp.float32)
        return m_new, l_new, acc_new

    init = (jnp.full((T, 1), -jnp.inf, jnp.float32),
            jnp.zeros((T, 1), jnp.float32),
            jnp.zeros((T, dh), jnp.float32))
    # Unrolled short loop: LLO scheduler can overlap EUP exp / VPU rescale / MXU.
    _, l_fin, acc_fin = jax.lax.fori_loop(0, num_kv, body, init, unroll=True)

    attn = acc_fin * pl.reciprocal(l_fin, approx=True)       # (T, dh) f32
    # Per-head out-projection (N = D, full lane width) accumulated into the
    # resident (T, D) output block — no lane-dim concat of dh-wide chunks.
    o_ref[0] += jnp.dot(attn.astype(jnp.bfloat16), wo_ref[0],
                        preferred_element_type=jnp.float32)


def fused_attention_block(x, feat_lens, p, heads):
    B, T, D = x.shape
    assert D % heads == 0
    dh = D // heads
    M = B * T

    # Stage A: LayerNorm + fused [D, 3D] QKV projection (bf16 output).
    qkv = pallas_ln_matmul(x.reshape(M, D), p["ln1_g"], p["ln1_b"],
                           p["wqkv"], p["bqkv"])              # (M, 3D) bf16
    qkv = qkv.reshape(B, T, 3, heads, dh)
    q = jnp.transpose(qkv[:, :, 0], (0, 2, 1, 3))             # (B, H, T, dh) bf16
    k = jnp.transpose(qkv[:, :, 1], (0, 2, 1, 3))
    v = jnp.transpose(qkv[:, :, 2], (0, 2, 1, 3))
    wo3 = p["wo"].reshape(heads, dh, D)                       # per-head Wo slices

    kv_tile = _pick_tile(T, 512)
    num_kv = T // kv_tile
    scale = 1.0 / (float(dh) ** 0.5)

    grid_spec = pltpu.PrefetchScalarGridSpec(
        num_scalar_prefetch=1,
        grid=(B, heads),
        in_specs=[
            pl.BlockSpec((1, T, D), lambda b, h, lens: (b, 0, 0)),       # residual
            pl.BlockSpec((1, 1, T, dh), lambda b, h, lens: (b, h, 0, 0)),  # Q
            pl.BlockSpec((1, 1, T, dh), lambda b, h, lens: (b, h, 0, 0)),  # K
            pl.BlockSpec((1, 1, T, dh), lambda b, h, lens: (b, h, 0, 0)),  # V
            pl.BlockSpec((1, dh, D), lambda b, h, lens: (h, 0, 0)),        # Wo[h]
            _const_spec((1, D), lambda b, h, lens: (0, 0)),                # bo
        ],
        out_specs=pl.BlockSpec((1, T, D), lambda b, h, lens: (b, 0, 0)),
    )
    return pl.pallas_call(
        functools.partial(_attn_head_kernel, kv_tile=kv_tile,
                          num_kv=num_kv, scale=scale),
        out_shape=jax.ShapeDtypeStruct((B, T, D), jnp.float32),
        grid_spec=grid_spec,
        compiler_params=pltpu.CompilerParams(
            dimension_semantics=("parallel", "arbitrary"),
            vmem_limit_bytes=_vmem_limit_bytes()),
    )(feat_lens, x, q, k, v, wo3, p["bo"])


# -----------------------------------------------------------------------------
# Fused pre-LN FFN block: LN -> W1 -> GELU -> W2 -> +x (bf16 intermediate)
# -----------------------------------------------------------------------------
def _ffn_block_kernel(x_ref, g_ref, b_ref, w1_ref, b1_ref, w2_ref, b2_ref,
                      o_ref):
    x = x_ref[...]                                    # (tm, D) f32
    mu = jnp.mean(x, axis=-1, keepdims=True)
    xc = x - mu
    var = jnp.mean(xc * xc, axis=-1, keepdims=True)
    h = (xc * jax.lax.rsqrt(var + 1e-5)) * g_ref[...] + b_ref[...]

    u = jnp.dot(h.astype(jnp.bfloat16), w1_ref[...],
                preferred_element_type=jnp.float32) + b1_ref[...]
    # TODO(synk): PyTorch nn.GELU defaults to exact erf; tanh approximation is
    #             used here to stay on guaranteed Mosaic elementwise lowerings.
    u = jax.nn.gelu(u, approximate=True).astype(jnp.bfloat16)  # keep (tm, F) bf16

    y = jnp.dot(u, w2_ref[...], preferred_element_type=jnp.float32) + b2_ref[...]
    o_ref[...] = (x + y).astype(o_ref.dtype)


def fused_ffn_block(x, p, *, tm_target=512):
    B, T, D = x.shape
    F = p["w1"].shape[1]
    M = B * T
    x2 = x.reshape(M, D)
    tm = _pick_tile(M, tm_target)
    # TODO(synk): for v7x at full XEUS sizes, additionally tile F as a reduction
    #             grid axis (acc scratch + pl.when finalize) instead of keeping
    #             the full (D,F)/(F,D) weights resident.
    out = pl.pallas_call(
        _ffn_block_kernel,
        out_shape=jax.ShapeDtypeStruct((M, D), jnp.float32),
        grid=(M // tm,),
        in_specs=[
            pl.BlockSpec((tm, D), lambda i: (i, 0)),
            _const_spec((1, D), lambda i: (0, 0)),
            _const_spec((1, D), lambda i: (0, 0)),
            _const_spec((D, F), lambda i: (0, 0)),
            _const_spec((1, F), lambda i: (0, 0)),
            _const_spec((F, D), lambda i: (0, 0)),
            _const_spec((1, D), lambda i: (0, 0)),
        ],
        out_specs=pl.BlockSpec((tm, D), lambda i: (i, 0)),
        compiler_params=pltpu.CompilerParams(
            dimension_semantics=("parallel",),
            vmem_limit_bytes=_vmem_limit_bytes()),
    )(x2, p["ln2_g"], p["ln2_b"], p["w1"], p["b1"], p["w2"], p["b2"])
    return out.reshape(B, T, D)


# -----------------------------------------------------------------------------
# Synthetic XEUS-style encoder built on the fused Pallas kernels
# -----------------------------------------------------------------------------
def init_params(key, *, patch, d_model, ffn, num_layers):
    def dense(k, fan_in, fan_out):
        # weights stored bf16 (MXU-native on v6e/v7x, halves weight DMA)
        return (0.02 * jax.random.normal(k, (fan_in, fan_out),
                                         jnp.float32)).astype(jnp.bfloat16)

    keys = jax.random.split(key, 1 + num_layers)
    params = {
        "frontend_w": dense(keys[0], patch, d_model),
        "frontend_b": jnp.zeros((1, d_model), jnp.float32),
        "layers": [],
    }
    for li in range(num_layers):
        lk = jax.random.split(keys[1 + li], 4)
        params["layers"].append({
            "ln1_g": jnp.ones((1, d_model), jnp.float32),
            "ln1_b": jnp.zeros((1, d_model), jnp.float32),
            "wqkv": dense(lk[0], d_model, 3 * d_model),
            "bqkv": jnp.zeros((1, 3 * d_model), jnp.float32),
            "wo": dense(lk[1], d_model, d_model),
            "bo": jnp.zeros((1, d_model), jnp.float32),
            "ln2_g": jnp.ones((1, d_model), jnp.float32),
            "ln2_b": jnp.zeros((1, d_model), jnp.float32),
            "w1": dense(lk[2], d_model, ffn),
            "b1": jnp.zeros((1, ffn), jnp.float32),
            "w2": dense(lk[3], ffn, d_model),
            "b2": jnp.zeros((1, d_model), jnp.float32),
        })
    return params


def xeus_encoder_forward(wav, length, params, *, patch, heads,
                         output_all_hiddens=False):
    """Mirrors XEUS_Encoder.forward: abs_lens = (length * wav.size(1)).long(),
    frozen encode(...) -> hidden states; returns all hiddens or the last one."""
    B, T = wav.shape
    abs_lens = (length * T).astype(jnp.int32)

    # Conv frontend (kernel==stride==patch) as a patchify matmul.
    # Cast activations to bf16 once here (halves A-operand HBM traffic).
    Tf = T // patch
    frames = wav[:, : Tf * patch].reshape(B * Tf, patch).astype(jnp.bfloat16)
    feats = pallas_matmul_bias(frames, params["frontend_w"],
                               params["frontend_b"])
    x = feats.reshape(B, Tf, -1)

    # Frame-rate valid lengths -> in-kernel key-padding mask.
    feat_lens = (abs_lens // patch).astype(jnp.int32)

    # TODO(synk): residual stream carried in f32 between blocks; bf16 would halve
    #             block-boundary HBM traffic at a (validated) precision cost.
    hiddens = [x] if output_all_hiddens else None
    for p in params["layers"]:
        x = fused_attention_block(x, feat_lens, p, heads)
        x = fused_ffn_block(x, p)
        if output_all_hiddens:
            hiddens.append(x)

    if output_all_hiddens:
        return jnp.stack(hiddens, axis=0)        # (L+1, B, Tf, D)
    return x                                     # last hidden only


# -----------------------------------------------------------------------------
if __name__ == "__main__":
    B, T_SAMPLES = 2, 128
    PATCH = 16                                   # -> 8 frames
    D_MODEL, HEADS, FFN, LAYERS = 32, 4, 64, 2

    # Populate feature probes OUTSIDE jit tracing (cached afterwards).
    _buffered_one_supported()
    _vmem_limit_bytes()

    key = jax.random.PRNGKey(0)
    k_wav, k_par = jax.random.split(key)
    wav = jax.random.normal(k_wav, (B, T_SAMPLES), jnp.float32)
    length = jnp.array([1.0, 0.75], jnp.float32)  # relative lengths (SpeechBrain)

    params = init_params(k_par, patch=PATCH, d_model=D_MODEL, ffn=FFN,
                         num_layers=LAYERS)

    # TODO(synk): real XEUS uses E-Branchformer blocks + relative position bias
    # loaded from a checkpoint; this synthetic stand-in keeps the same
    # length-masked encode() control flow with plain pre-LN transformer blocks.
    fwd = jax.jit(functools.partial(xeus_encoder_forward, patch=PATCH,
                                    heads=HEADS, output_all_hiddens=False))
    out = fwd(wav, length, params)
    out = jax.block_until_ready(out)

    assert out.shape == (B, T_SAMPLES // PATCH, D_MODEL)
    assert bool(jnp.all(jnp.isfinite(out)))
    print("KERNEL_OK")
</pallas_src>

<mosaic_0001>
module attributes {stable_mosaic.version = 11 : i64} {
  func.func @k(%arg0: i32, %arg1: memref<8x128xf32, #tpu.memory_space<vmem>>, %arg2: memref<8x128xf32, #tpu.memory_space<vmem>>, %arg3: memref<8x128xf32, #tpu.memory_space<vmem>>) attributes {dimension_semantics = [#tpu.dimension_semantics<arbitrary>], iteration_bounds = array<i64: 2>, scalar_prefetch = 0 : i64, scratch_operands = 0 : i64, tpu.core_type = #tpu.core_type<tc>, window_params = [{transform_indices = @transform_0, window_bounds = array<i64: 8, 128>}, {pipeline_mode = #tpu.pipeline_mode<synchronous>, transform_indices = @transform_1, window_bounds = array<i64: 8, 128>}, {transform_indices = @transform_2, window_bounds = array<i64: 8, 128>}]} {
    %c0 = arith.constant 0 : index
    %c0_0 = arith.constant 0 : index
    %0 = vector.load %arg1[%c0, %c0_0] : memref<8x128xf32, #tpu.memory_space<vmem>>, vector<8x128xf32>
    %c0_1 = arith.constant 0 : index
    %c0_2 = arith.constant 0 : index
    %1 = vector.load %arg2[%c0_1, %c0_2] : memref<8x128xf32, #tpu.memory_space<vmem>>, vector<8x128xf32>
    %2 = arith.addf %0, %1 : vector<8x128xf32>
    %c0_3 = arith.constant 0 : index
    %c0_4 = arith.constant 0 : index
    %3 = vector.load %arg3[%c0_3, %c0_4] : memref<8x128xf32, #tpu.memory_space<vmem>>, vector<8x128xf32>
    tpu.vector_store %arg3[%c0_3, %c0_4], %2 {strides = array<i32>} : memref<8x128xf32, #tpu.memory_space<vmem>>, vector<8x128xf32>,
    return
  }
  func.func @transform_0(%arg0: i32) -> (i32, i32) {
    %c0_i32 = arith.constant 0 : i32
    %c0_i32_0 = arith.constant 0 : i32
    return %arg0, %c0_i32 : i32, i32
  }
  func.func @transform_1(%arg0: i32) -> (i32, i32) {
    %c0_i32 = arith.constant 0 : i32
    %c0_i32_0 = arith.constant 0 : i32
    %c0_i32_1 = arith.constant 0 : i32
    return %c0_i32, %c0_i32_0 : i32, i32
  }
  func.func @transform_2(%arg0: i32) -> (i32, i32) {
    %c0_i32 = arith.constant 0 : i32
    %c0_i32_0 = arith.constant 0 : i32
    return %arg0, %c0_i32 : i32, i32
  }
}

module attributes {stable_mosaic.version = 11 : i64} {
  func.func @_ln_matmul_kernel(%arg0: i32, %arg1: memref<16x32xf32, #tpu.memory_space<vmem>>, %arg2: memref<1x32xf32, #tpu.memory_space<vmem>>, %arg3: memref<1x32xf32, #tpu.memory_space<vmem>>, %arg4: memref<32x96xbf16, #tpu.memory_space<vmem>>, %arg5: memref<1x96xf32, #tpu.memory_space<vmem>>, %arg6: memref<16x96xbf16, #tpu.memory_space<vmem>>) attributes {dimension_semantics = [#tpu.dimension_semantics<parallel>], iteration_bounds = array<i64: 1>, scalar_prefetch = 0 : i64, scratch_operands = 0 : i64, tpu.core_type = #tpu.core_type<tc>, window_params = [{transform_indices = @transform_0, window_bounds = array<i64: 16, 32>}, {pipeline_mode = #tpu.pipeline_mode<synchronous>, transform_indices = @transform_1, window_bounds = array<i64: 1, 32>}, {pipeline_mode = #tpu.pipeline_mode<synchronous>, transform_indices = @transform_2, window_bounds = array<i64: 1, 32>}, {pipeline_mode = #tpu.pipeline_mode<synchronous>, transform_indices = @transform_3, window_bounds = array<i64: 32, 96>}, {pipeline_mode = #tpu.pipeline_mode<synchronous>, transform_indices = @transform_4, window_bounds = array<i64: 1, 96>}, {transform_indices = @transform_5, window_bounds = array<i64: 16, 96>}]} {
    %c0 = arith.constant 0 : index
    %c0_0 = arith.constant 0 : index
    %0 = vector.load %arg1[%c0, %c0_0] : memref<16x32xf32, #tpu.memory_space<vmem>>, vector<16x32xf32>
    %cst = arith.constant dense<0.000000e+00> : vector<16xf32>
    %1 = vector.multi_reduction <add>, %0, %cst [1] : vector<16x32xf32> to vector<16xf32>
    %2 = vector.shape_cast %1 : vector<16xf32> to vector<16x1xf32>
    %cst_1 = arith.constant 3.200000e+01 : f32
    %3 = vector.broadcast %cst_1 : f32 to vector<16x1xf32>
    %4 = arith.divf %2, %3 : vector<16x1xf32>
    %5 = vector.broadcast %4 : vector<16x1xf32> to vector<16x32xf32>
    %6 = arith.subf %0, %5 : vector<16x32xf32>
    %7 = arith.mulf %6, %6 : vector<16x32xf32>
    %cst_2 = arith.constant dense<0.000000e+00> : vector<16xf32>
    %8 = vector.multi_reduction <add>, %7, %cst_2 [1] : vector<16x32xf32> to vector<16xf32>
    %9 = vector.shape_cast %8 : vector<16xf32> to vector<16x1xf32>
    %cst_3 = arith.constant 3.200000e+01 : f32
    %10 = vector.broadcast %cst_3 : f32 to vector<16x1xf32>
    %11 = arith.divf %9, %10 : vector<16x1xf32>
    %cst_4 = arith.constant 9.99999974E-6 : f32
    %12 = vector.broadcast %cst_4 : f32 to vector<16x1xf32>
    %13 = arith.addf %11, %12 : vector<16x1xf32>
    %14 = math.rsqrt %13 : vector<16x1xf32>
    %15 = vector.broadcast %14 : vector<16x1xf32> to vector<16x32xf32>
    %16 = arith.mulf %6, %15 : vector<16x32xf32>
    %c0_5 = arith.constant 0 : index
    %c0_6 = arith.constant 0 : index
    %17 = vector.load %arg2[%c0_5, %c0_6] : memref<1x32xf32, #tpu.memory_space<vmem>>, vector<1x32xf32>
    %18 = vector.broadcast %17 : vector<1x32xf32> to vector<16x32xf32>
    %19 = arith.mulf %16, %18 : vector<16x32xf32>
    %c0_7 = arith.constant 0 : index
    %c0_8 = arith.constant 0 : index
    %20 = vector.load %arg3[%c0_7, %c0_8] : memref<1x32xf32, #tpu.memory_space<vmem>>, vector<1x32xf32>
    %21 = vector.broadcast %20 : vector<1x32xf32> to vector<16x32xf32>
    %22 = arith.addf %19, %21 : vector<16x32xf32>
    %23 = arith.truncf %22 : vector<16x32xf32> to vector<16x32xbf16>
    %c0_9 = arith.constant 0 : index
    %c0_10 = arith.constant 0 : index
    %24 = vector.load %arg4[%c0_9, %c0_10] : memref<32x96xbf16, #tpu.memory_space<vmem>>, vector<32x96xbf16>
    %cst_11 = arith.constant dense<0.000000e+00> : vector<16x96xf32>
    %25 = tpu.matmul %23, %24, %cst_11 {dimension_numbers = #tpu.dot_dimension_numbers<[1], [0], [0], [1], [0, 0, 1, 1], [], []>} : vector<16x32xbf16>, vector<32x96xbf16>, vector<16x96xf32> -> vector<16x96xf32>
    %c0_12 = arith.constant 0 : index
    %c0_13 = arith.constant 0 : index
    %26 = vector.load %arg5[%c0_12, %c0_13] : memref<1x96xf32, #tpu.memory_space<vmem>>, vector<1x96xf32>
    %27 = vector.broadcast %26 : vector<1x96xf32> to vector<16x96xf32>
    %28 = arith.addf %25, %27 : vector<16x96xf32>
    %29 = arith.truncf %28 : vector<16x96xf32> to vector<16x96xbf16>
    %c0_14 = arith.constant 0 : index
    %c0_15 = arith.constant 0 : index
    %30 = vector.load %arg6[%c0_14, %c0_15] : memref<16x96xbf16, #tpu.memory_space<vmem>>, vector<16x96xbf16>
    tpu.vector_store %arg6[%c0_14, %c0_15], %29 {strides = array<i32>} : memref<16x96xbf16, #tpu.memory_space<vmem>>, vector<16x96xbf16>,
    return
  }
  func.func @transform_0(%arg0: i32) -> (i32, i32) {
    %c0_i32 = arith.constant 0 : i32
    %c0_i32_0 = arith.constant 0 : i32
    return %arg0, %c0_i32 : i32, i32
  }
  func.func @transform_1(%arg0: i32) -> (i32, i32) {
    %c0_i32 = arith.constant 0 : i32
    %c0_i32_0 = arith.constant 0 : i32
    %c0_i32_1 = arith.constant 0 : i32
    return %c0_i32, %c0_i32_0 : i32, i32
  }
  func.func @transform_2(%arg0: i32) -> (i32, i32) {
    %c0_i32 = arith.constant 0 : i32
    %c0_i32_0 = arith.constant 0 : i32
    %c0_i32_1 = arith.constant 0 : i32
    return %c0_i32, %c0_i32_0 : i32, i32
  }
  func.func @transform_3(%arg0: i32) -> (i32, i32) {
    %c0_i32 = arith.constant 0 : i32
    %c0_i32_0 = arith.constant 0 : i32
    %c0_i32_1 = arith.constant 0 : i32
    return %c0_i32, %c0_i32_0 : i32, i32
  }
  func.func @transform_4(%arg0: i32) -> (i32, i32) {
    %c0_i32 = arith.constant 0 : i32
    %c0_i32_0 = arith.constant 0 : i32
    %c0_i32_1 = arith.constant 0 : i32
    return %c0_i32, %c0_i32_0 : i32, i32
  }
  func.func @transform_5(%arg0: i32) -> (i32, i32) {
    %c0_i32 = arith.constant 0 : i32
    %c0_i32_0 = arith.constant 0 : i32
    return %arg0, %c0_i32 : i32, i32
  }
}

module attributes {stable_mosaic.version = 11 : i64} {
  func.func @_matmul_bias_kernel(%arg0: i32, %arg1: i32, %arg2: i32, %arg3: memref<16x16xbf16, #tpu.memory_space<vmem>>, %arg4: memref<16x32xbf16, #tpu.memory_space<vmem>>, %arg5: memref<1x32xf32, #tpu.memory_space<vmem>>, %arg6: memref<16x32xf32, #tpu.memory_space<vmem>>, %arg7: memref<16x32xf32, #tpu.memory_space<vmem>>) attributes {dimension_semantics = [#tpu.dimension_semantics<parallel>, #tpu.dimension_semantics<parallel>, #tpu.dimension_semantics<arbitrary>], iteration_bounds = array<i64: 1, 1, 1>, scalar_prefetch = 0 : i64, scratch_operands = 1 : i64, tpu.core_type = #tpu.core_type<tc>, window_params = [{transform_indices = @transform_0, window_bounds = array<i64: 16, 16>}, {transform_indices = @transform_1, window_bounds = array<i64: 16, 32>}, {transform_indices = @transform_2, window_bounds = array<i64: 1, 32>}, {transform_indices = @transform_3, window_bounds = array<i64: 16, 32>}]} {
    %c0_i32 = arith.constant 0 : i32
    %0 = arith.cmpi eq, %arg2, %c0_i32 : i32
    %1 = arith.extui %0 : i1 to i32
    %c0_i32_0 = arith.constant 0 : i32
    %2 = arith.cmpi ne, %1, %c0_i32_0 : i32
    scf.if %2 {
      %cst_10 = arith.constant 0.000000e+00 : f32
      %12 = vector.broadcast %cst_10 : f32 to vector<16x32xf32>
      %c0_11 = arith.constant 0 : index
      %c0_12 = arith.constant 0 : index
      %13 = vector.load %arg7[%c0_11, %c0_12] : memref<16x32xf32, #tpu.memory_space<vmem>>, vector<16x32xf32>
      tpu.vector_store %arg7[%c0_11, %c0_12], %12 {strides = array<i32>} : memref<16x32xf32, #tpu.memory_space<vmem>>, vector<16x32xf32>,
    } else {
    }
    %c0 = arith.constant 0 : index
    %c0_1 = arith.constant 0 : index
    %3 = vector.load %arg7[%c0, %c0_1] : memref<16x32xf32, #tpu.memory_space<vmem>>, vector<16x32xf32>
    %c0_2 = arith.constant 0 : index
    %c0_3 = arith.constant 0 : index
    %4 = vector.load %arg3[%c0_2, %c0_3] : memref<16x16xbf16, #tpu.memory_space<vmem>>, vector<16x16xbf16>
    %c0_4 = arith.constant 0 : index
    %c0_5 = arith.constant 0 : index
    %5 = vector.load %arg4[%c0_4, %c0_5] : memref<16x32xbf16, #tpu.memory_space<vmem>>, vector<16x32xbf16>
    %cst = arith.constant dense<0.000000e+00> : vector<16x32xf32>
    %6 = tpu.matmul %4, %5, %cst {dimension_numbers = #tpu.dot_dimension_numbers<[1], [0], [0], [1], [0, 0, 1, 1], [], []>} : vector<16x16xbf16>, vector<16x32xbf16>, vector<16x32xf32> -> vector<16x32xf32>
    %7 = arith.addf %3, %6 : vector<16x32xf32>
    %c0_6 = arith.constant 0 : index
    %c0_7 = arith.constant 0 : index
    %8 = vector.load %arg7[%c0_6, %c0_7] : memref<16x32xf32, #tpu.memory_space<vmem>>, vector<16x32xf32>
    tpu.vector_store %arg7[%c0_6, %c0_7], %7 {strides = array<i32>} : memref<16x32xf32, #tpu.memory_space<vmem>>, vector<16x32xf32>,
    %c0_i32_8 = arith.constant 0 : i32
    %9 = arith.cmpi eq, %arg2, %c0_i32_8 : i32
    %10 = arith.extui %9 : i1 to i32
    %c0_i32_9 = arith.constant 0 : i32
    %11 = arith.cmpi ne, %10, %c0_i32_9 : i32
    scf.if %11 {
      %c0_10 = arith.constant 0 : index
      %c0_11 = arith.constant 0 : index
      %12 = vector.load %arg7[%c0_10, %c0_11] : memref<16x32xf32, #tpu.memory_space<vmem>>, vector<16x32xf32>
      %c0_12 = arith.constant 0 : index
      %c0_13 = arith.constant 0 : index
      %13 = vector.load %arg5[%c0_12, %c0_13] : memref<1x32xf32, #tpu.memory_space<vmem>>, vector<1x32xf32>
      %14 = vector.broadcast %13 : vector<1x32xf32> to vector<16x32xf32>
      %15 = arith.addf %12, %14 : vector<16x32xf32>
      %c0_14 = arith.constant 0 : index
      %c0_15 = arith.constant 0 : index
      %16 = vector.load %arg6[%c0_14, %c0_15] : memref<16x32xf32, #tpu.memory_space<vmem>>, vector<16x32xf32>
      tpu.vector_store %arg6[%c0_14, %c0_15], %15 {strides = array<i32>} : memref<16x32xf32, #tpu.memory_space<vmem>>, vector<16x32xf32>,
    } else {
    }
    return
  }
  func.func @transform_0(%arg0: i32, %arg1: i32, %arg2: i32) -> (i32, i32) {
    %c0_i32 = arith.constant 0 : i32
    return %arg0, %arg2 : i32, i32
  }
  func.func @transform_1(%arg0: i32, %arg1: i32, %arg2: i32) -> (i32, i32) {
    %c0_i32 = arith.constant 0 : i32
    return %arg2, %arg1 : i32, i32
  }
  func.func @transform_2(%arg0: i32, %arg1: i32, %arg2: i32) -> (i32, i32) {
    %c0_i32 = arith.constant 0 : i32
    %c0_i32_0 = arith.constant 0 : i32
    return %c0_i32, %arg1 : i32, i32
  }
  func.func @transform_3(%arg0: i32, %arg1: i32, %arg2: i32) -> (i32, i32) {
    %c0_i32 = arith.constant 0 : i32
    return %arg0, %arg1 : i32, i32
  }
}

module attributes {stable_mosaic.version = 11 : i64} {
  func.func @_ffn_block_kernel(%arg0: i32, %arg1: memref<16x32xf32, #tpu.memory_space<vmem>>, %arg2: memref<1x32xf32, #tpu.memory_space<vmem>>, %arg3: memref<1x32xf32, #tpu.memory_space<vmem>>, %arg4: memref<32x64xbf16, #tpu.memory_space<vmem>>, %arg5: memref<1x64xf32, #tpu.memory_space<vmem>>, %arg6: memref<64x32xbf16, #tpu.memory_space<vmem>>, %arg7: memref<1x32xf32, #tpu.memory_space<vmem>>, %arg8: memref<16x32xf32, #tpu.memory_space<vmem>>) attributes {dimension_semantics = [#tpu.dimension_semantics<parallel>], iteration_bounds = array<i64: 1>, scalar_prefetch = 0 : i64, scratch_operands = 0 : i64, tpu.core_type = #tpu.core_type<tc>, window_params = [{transform_indices = @transform_0, window_bounds = array<i64: 16, 32>}, {pipeline_mode = #tpu.pipeline_mode<synchronous>, transform_indices = @transform_1, window_bounds = array<i64: 1, 32>}, {pipeline_mode = #tpu.pipeline_mode<synchronous>, transform_indices = @transform_2, window_bounds = array<i64: 1, 32>}, {pipeline_mode = #tpu.pipeline_mode<synchronous>, transform_indices = @transform_3, window_bounds = array<i64: 32, 64>}, {pipeline_mode = #tpu.pipeline_mode<synchronous>, transform_indices = @transform_4, window_bounds = array<i64: 1, 64>}, {pipeline_mode = #tpu.pipeline_mode<synchronous>, transform_indices = @transform_5, window_bounds = array<i64: 64, 32>}, {pipeline_mode = #tpu.pipeline_mode<synchronous>, transform_indices = @transform_6, window_bounds = array<i64: 1, 32>}, {transform_indices = @transform_7, window_bounds = array<i64: 16, 32>}]} {
    %c0 = arith.constant 0 : index
    %c0_0 = arith.constant 0 : index
    %0 = vector.load %arg1[%c0, %c0_0] : memref<16x32xf32, #tpu.memory_space<vmem>>, vector<16x32xf32>
    %cst = arith.constant dense<0.000000e+00> : vector<16xf32>
    %1 = vector.multi_reduction <add>, %0, %cst [1] : vector<16x32xf32> to vector<16xf32>
    %2 = vector.shape_cast %1 : vector<16xf32> to vector<16x1xf32>
    %cst_1 = arith.constant 3.200000e+01 : f32
    %3 = vector.broadcast %cst_1 : f32 to vector<16x1xf32>
    %4 = arith.divf %2, %3 : vector<16x1xf32>
    %5 = vector.broadcast %4 : vector<16x1xf32> to vector<16x32xf32>
    %6 = arith.subf %0, %5 : vector<16x32xf32>
    %7 = arith.mulf %6, %6 : vector<16x32xf32>
    %cst_2 = arith.constant dense<0.000000e+00> : vector<16xf32>
    %8 = vector.multi_reduction <add>, %7, %cst_2 [1] : vector<16x32xf32> to vector<16xf32>
    %9 = vector.shape_cast %8 : vector<16xf32> to vector<16x1xf32>
    %cst_3 = arith.constant 3.200000e+01 : f32
    %10 = vector.broadcast %cst_3 : f32 to vector<16x1xf32>
    %11 = arith.divf %9, %10 : vector<16x1xf32>
    %cst_4 = arith.constant 9.99999974E-6 : f32
    %12 = vector.broadcast %cst_4 : f32 to vector<16x1xf32>
    %13 = arith.addf %11, %12 : vector<16x1xf32>
    %14 = math.rsqrt %13 : vector<16x1xf32>
    %15 = vector.broadcast %14 : vector<16x1xf32> to vector<16x32xf32>
    %16 = arith.mulf %6, %15 : vector<16x32xf32>
    %c0_5 = arith.constant 0 : index
    %c0_6 = arith.constant 0 : index
    %17 = vector.load %arg2[%c0_5, %c0_6] : memref<1x32xf32, #tpu.memory_space<vmem>>, vector<1x32xf32>
    %18 = vector.broadcast %17 : vector<1x32xf32> to vector<16x32xf32>
    %19 = arith.mulf %16, %18 : vector<16x32xf32>
    %c0_7 = arith.constant 0 : index
    %c0_8 = arith.constant 0 : index
    %20 = vector.load %arg3[%c0_7, %c0_8] : memref<1x32xf32, #tpu.memory_space<vmem>>, vector<1x32xf32>
    %21 = vector.broadcast %20 : vector<1x32xf32> to vector<16x32xf32>
    %22 = arith.addf %19, %21 : vector<16x32xf32>
    %23 = arith.truncf %22 : vector<16x32xf32> to vector<16x32xbf16>
    %c0_9 = arith.constant 0 : index
    %c0_10 = arith.constant 0 : index
    %24 = vector.load %arg4[%c0_9, %c0_10] : memref<32x64xbf16, #tpu.memory_space<vmem>>, vector<32x64xbf16>
    %cst_11 = arith.constant dense<0.000000e+00> : vector<16x64xf32>
    %25 = tpu.matmul %23, %24, %cst_11 {dimension_numbers = #tpu.dot_dimension_numbers<[1], [0], [0], [1], [0, 0, 1, 1], [], []>} : vector<16x32xbf16>, vector<32x64xbf16>, vector<16x64xf32> -> vector<16x64xf32>
    %c0_12 = arith.constant 0 : index
    %c0_13 = arith.constant 0 : index
    %26 = vector.load %arg5[%c0_12, %c0_13] : memref<1x64xf32, #tpu.memory_space<vmem>>, vector<1x64xf32>
    %27 = vector.broadcast %26 : vector<1x64xf32> to vector<16x64xf32>
    %28 = arith.addf %25, %27 : vector<16x64xf32>
    %29 = arith.mulf %28, %28 : vector<16x64xf32>
    %30 = arith.mulf %28, %29 : vector<16x64xf32>
    %cst_14 = arith.constant 4.471500e-02 : f32
    %31 = vector.broadcast %cst_14 : f32 to vector<16x64xf32>
    %32 = arith.mulf %31, %30 : vector<16x64xf32>
    %33 = arith.addf %28, %32 : vector<16x64xf32>
    %cst_15 = arith.constant 0.797884583 : f32
    %34 = vector.broadcast %cst_15 : f32 to vector<16x64xf32>
    %35 = arith.mulf %34, %33 : vector<16x64xf32>
    %36 = math.tanh %35 : vector<16x64xf32>
    %cst_16 = arith.constant 1.000000e+00 : f32
    %37 = vector.broadcast %cst_16 : f32 to vector<16x64xf32>
    %38 = arith.addf %37, %36 : vector<16x64xf32>
    %cst_17 = arith.constant 5.000000e-01 : f32
    %39 = vector.broadcast %cst_17 : f32 to vector<16x64xf32>
    %40 = arith.mulf %39, %38 : vector<16x64xf32>
    %41 = arith.mulf %28, %40 : vector<16x64xf32>
    %42 = arith.truncf %41 : vector<16x64xf32> to vector<16x64xbf16>
    %c0_18 = arith.constant 0 : index
    %c0_19 = arith.constant 0 : index
    %43 = vector.load %arg6[%c0_18, %c0_19] : memref<64x32xbf16, #tpu.memory_space<vmem>>, vector<64x32xbf16>
    %cst_20 = arith.constant dense<0.000000e+00> : vector<16x32xf32>
    %44 = tpu.matmul %42, %43, %cst_20 {dimension_numbers = #tpu.dot_dimension_numbers<[1], [0], [0], [1], [0, 0, 1, 1], [], []>} : vector<16x64xbf16>, vector<64x32xbf16>, vector<16x32xf32> -> vector<16x32xf32>
    %c0_21 = arith.constant 0 : index
    %c0_22 = arith.constant 0 : index
    %45 = vector.load %arg7[%c0_21, %c0_22] : memref<1x32xf32, #tpu.memory_space<vmem>>, vector<1x32xf32>
    %46 = vector.broadcast %45 : vector<1x32xf32> to vector<16x32xf32>
    %47 = arith.addf %44, %46 : vector<16x32xf32>
    %48 = arith.addf %0, %47 : vector<16x32xf32>
    %c0_23 = arith.constant 0 : index
    %c0_24 = arith.constant 0 : index
    %49 = vector.load %arg8[%c0_23, %c0_24] : memref<16x32xf32, #tpu.memory_space<vmem>>, vector<16x32xf32>
    tpu.vector_store %arg8[%c0_23, %c0_24], %48 {strides = array<i32>} : memref<16x32xf32, #tpu.memory_space<vmem>>, vector<16x32xf32>,
    return
  }
  func.func @transform_0(%arg0: i32) -> (i32, i32) {
    %c0_i32 = arith.constant 0 : i32
    %c0_i32_0 = arith.constant 0 : i32
    return %arg0, %c0_i32 : i32, i32
  }
  func.func @transform_1(%arg0: i32) -> (i32, i32) {
    %c0_i32 = arith.constant 0 : i32
    %c0_i32_0 = arith.constant 0 : i32
    %c0_i32_1 = arith.constant 0 : i32
    return %c0_i32, %c0_i32_0 : i32, i32
  }
  func.func @transform_2(%arg0: i32) -> (i32, i32) {
    %c0_i32 = arith.constant 0 : i32
    %c0_i32_0 = arith.constant 0 : i32
    %c0_i32_1 = arith.constant 0 : i32
    return %c0_i32, %c0_i32_0 : i32, i32
  }
  func.func @transform_3(%arg0: i32) -> (i32, i32) {
    %c0_i32 = arith.constant 0 : i32
    %c0_i32_0 = arith.constant 0 : i32
    %c0_i32_1 = arith.constant 0 : i32
    return %c0_i32, %c0_i32_0 : i32, i32
  }
  func.func @transform_4(%arg0: i32) -> (i32, i32) {
    %c0_i32 = arith.constant 0 : i32
    %c0_i32_0 = arith.constant 0 : i32
    %c0_i32_1 = arith.constant 0 : i32
    return %c0_i32, %c0_i32_0 : i32, i32
  }
  func.func @transform_5(%arg0: i32) -> (i32, i32) {
    %c0_i32 = arith.constant 0 : i32
    %c0_i32_0 = arith.constant 0 : i32
    %c0_i32_1 = arith.constant 0 : i32
    return %c0_i32, %c0_i32_0 : i32, i32
  }
  func.func @transform_6(%arg0: i32) -> (i32, i32) {
    %c0_i32 = arith.constant 0 : i32
    %c0_i32_0 = arith.constant 0 : i32
    %c0_i32_1 = arith.constant 0 : i32
    return %c0_i32, %c0_i32_0 : i32, i32
  }
  func.func @transform_7(%arg0: i32) -> (i32, i32) {
    %c0_i32 = arith.constant 0 : i32
    %c0_i32_0 = arith.constant 0 : i32
    return %arg0, %c0_i32 : i32, i32
  }
}

module attributes {stable_mosaic.version = 11 : i64} {
  func.func @_attn_head_kernel(%arg0: i32, %arg1: i32, %arg2: memref<2xi32, #tpu.memory_space<smem>>, %arg3: memref<1x8x32xf32, #tpu.memory_space<vmem>>, %arg4: memref<1x1x8x8xbf16, #tpu.memory_space<vmem>>, %arg5: memref<1x1x8x8xbf16, #tpu.memory_space<vmem>>, %arg6: memref<1x1x8x8xbf16, #tpu.memory_space<vmem>>, %arg7: memref<1x8x32xbf16, #tpu.memory_space<vmem>>, %arg8: memref<1x32xf32, #tpu.memory_space<vmem>>, %arg9: memref<1x8x32xf32, #tpu.memory_space<vmem>>) attributes {dimension_semantics = [#tpu.dimension_semantics<parallel>, #tpu.dimension_semantics<arbitrary>], iteration_bounds = array<i64: 2, 4>, scalar_prefetch = 1 : i64, scratch_operands = 0 : i64, tpu.core_type = #tpu.core_type<tc>, window_params = [{transform_indices = @transform_0, window_bounds = array<i64: 1, 8, 32>}, {transform_indices = @transform_1, window_bounds = array<i64: 1, 1, 8, 8>}, {transform_indices = @transform_2, window_bounds = array<i64: 1, 1, 8, 8>}, {transform_indices = @transform_3, window_bounds = array<i64: 1, 1, 8, 8>}, {transform_indices = @transform_4, window_bounds = array<i64: 1, 8, 32>}, {pipeline_mode = #tpu.pipeline_mode<synchronous>, transform_indices = @transform_5, window_bounds = array<i64: 1, 32>}, {transform_indices = @transform_6, window_bounds = array<i64: 1, 8, 32>}]} {
    %0 = arith.index_cast %arg0 : i32 to index
    %1 = memref.load %arg2[%0] : memref<2xi32, #tpu.memory_space<smem>>
    %c0_i32 = arith.constant 0 : i32
    %2 = arith.cmpi eq, %arg1, %c0_i32 : i32
    %3 = arith.extui %2 : i1 to i32
    %c0_i32_0 = arith.constant 0 : i32
    %4 = arith.cmpi ne, %3, %c0_i32_0 : i32
    scf.if %4 {
      %c0_30 = arith.constant 0 : index
      %c0_31 = arith.constant 0 : index
      %c0_32 = arith.constant 0 : index
      %64 = vector.load %arg3[%c0_30, %c0_31, %c0_32] : memref<1x8x32xf32, #tpu.memory_space<vmem>>, vector<1x8x32xf32>
      %65 = vector.shape_cast %64 : vector<1x8x32xf32> to vector<8x32xf32>
      %c0_33 = arith.constant 0 : index
      %c0_34 = arith.constant 0 : index
      %66 = vector.load %arg8[%c0_33, %c0_34] : memref<1x32xf32, #tpu.memory_space<vmem>>, vector<1x32xf32>
      %67 = vector.broadcast %66 : vector<1x32xf32> to vector<8x32xf32>
      %68 = arith.addf %65, %67 : vector<8x32xf32>
      %c0_35 = arith.constant 0 : index
      %c0_36 = arith.constant 0 : index
      %c0_37 = arith.constant 0 : index
      %69 = vector.load %arg9[%c0_35, %c0_36, %c0_37] : memref<1x8x32xf32, #tpu.memory_space<vmem>>, vector<1x8x32xf32>
      %70 = vector.shape_cast %69 : vector<1x8x32xf32> to vector<8x32xf32>
      %71 = vector.shape_cast %68 : vector<8x32xf32> to vector<1x8x32xf32>
      tpu.vector_store %arg9[%c0_35, %c0_36, %c0_37], %71 {strides = array<i32>} : memref<1x8x32xf32, #tpu.memory_space<vmem>>, vector<1x8x32xf32>,
    } else {
    }
    %c0 = arith.constant 0 : index
    %c0_1 = arith.constant 0 : index
    %c0_2 = arith.constant 0 : index
    %c0_3 = arith.constant 0 : index
    %5 = vector.load %arg4[%c0, %c0_1, %c0_2, %c0_3] : memref<1x1x8x8xbf16, #tpu.memory_space<vmem>>, vector<1x1x8x8xbf16>
    %6 = vector.shape_cast %5 : vector<1x1x8x8xbf16> to vector<8x8xbf16>
    %7 = arith.extf %6 : vector<8x8xbf16> to vector<8x8xf32>
    %cst = arith.constant 0.353553385 : f32
    %8 = vector.broadcast %cst : f32 to vector<8x8xf32>
    %9 = arith.mulf %7, %8 : vector<8x8xf32>
    %10 = arith.truncf %9 : vector<8x8xf32> to vector<8x8xbf16>
    %cst_4 = arith.constant 0xFF800000 : f32
    %11 = vector.broadcast %cst_4 : f32 to vector<8x1xf32>
    %cst_5 = arith.constant 0.000000e+00 : f32
    %12 = vector.broadcast %cst_5 : f32 to vector<8x1xf32>
    %cst_6 = arith.constant 0.000000e+00 : f32
    %13 = vector.broadcast %cst_6 : f32 to vector<8x8xf32>
    %c0_i32_7 = arith.constant 0 : i32
    %c8_i32 = arith.constant 8 : i32
    %14 = arith.muli %c0_i32_7, %c8_i32 : i32
    %15 = tpu.assume_multiple %14, 8 : i32
    %c0_8 = arith.constant 0 : index
    %c0_9 = arith.constant 0 : index
    %16 = arith.index_cast %15 : i32 to index
    %c0_10 = arith.constant 0 : index
    %17 = vector.load %arg5[%c0_8, %c0_9, %16, %c0_10] : memref<1x1x8x8xbf16, #tpu.memory_space<vmem>>, vector<1x1x8x8xbf16>
    %18 = vector.shape_cast %17 : vector<1x1x8x8xbf16> to vector<8x8xbf16>
    %c0_11 = arith.constant 0 : index
    %c0_12 = arith.constant 0 : index
    %19 = arith.index_cast %15 : i32 to index
    %c0_13 = arith.constant 0 : index
    %20 = vector.load %arg6[%c0_11, %c0_12, %19, %c0_13] : memref<1x1x8x8xbf16, #tpu.memory_space<vmem>>, vector<1x1x8x8xbf16>
    %21 = vector.shape_cast %20 : vector<1x1x8x8xbf16> to vector<8x8xbf16>
    %22 = tpu.transpose %18, [1, 0] : vector<8x8xbf16> -> vector<8x8xbf16>
    %cst_14 = arith.constant dense<0.000000e+00> : vector<8x8xf32>
    %23 = tpu.matmul %10, %22, %cst_14 {dimension_numbers = #tpu.dot_dimension_numbers<[1], [0], [0], [1], [0, 0, 1, 1], [], []>} : vector<8x8xbf16>, vector<8x8xbf16>, vector<8x8xf32> -> vector<8x8xf32>
    %24 = tpu.iota {dimensions = array<i32: 1>} : vector<1x8xi32>
    %25 = vector.broadcast %15 : i32 to vector<1x8xi32>
    %26 = arith.addi %25, %24 : vector<1x8xi32>
    %27 = vector.broadcast %1 : i32 to vector<1x8xi32>
    %28 = arith.cmpi slt, %26, %27 : vector<1x8xi32>
    %cst_15 = arith.constant 0.000000e+00 : f32
    %cst_16 = arith.constant -1.000000e+09 : f32
    %29 = vector.broadcast %cst_15 : f32 to vector<1x8xf32>
    %30 = vector.broadcast %cst_16 : f32 to vector<1x8xf32>
    %31 = arith.select %28, %29, %30 : vector<1x8xi1>, vector<1x8xf32>
    %32 = vector.broadcast %31 : vector<1x8xf32> to vector<8x8xf32>
    %33 = arith.addf %23, %32 : vector<8x8xf32>
    %cst_17 = arith.constant dense<0xFF800000> : vector<8xf32>
    %34 = vector.multi_reduction <maximumf>, %33, %cst_17 [1] : vector<8x8xf32> to vector<8xf32>
    %35 = vector.shape_cast %34 : vector<8xf32> to vector<8x1xf32>
    %36 = arith.maximumf %11, %35 : vector<8x1xf32>
    %37 = arith.subf %11, %36 : vector<8x1xf32>
    %38 = math.exp %37 : vector<8x1xf32>
    %39 = vector.broadcast %36 : vector<8x1xf32> to vector<8x8xf32>
    %40 = arith.subf %33, %39 : vector<8x8xf32>
    %41 = math.exp %40 : vector<8x8xf32>
    %42 = arith.mulf %38, %12 : vector<8x1xf32>
    %cst_18 = arith.constant dense<0.000000e+00> : vector<8xf32>
    %43 = vector.multi_reduction <add>, %41, %cst_18 [1] : vector<8x8xf32> to vector<8xf32>
    %44 = vector.shape_cast %43 : vector<8xf32> to vector<8x1xf32>
    %45 = arith.addf %42, %44 : vector<8x1xf32>
    %46 = vector.broadcast %38 : vector<8x1xf32> to vector<8x8xf32>
    %47 = arith.mulf %46, %13 : vector<8x8xf32>
    %48 = arith.truncf %41 : vector<8x8xf32> to vector<8x8xbf16>
    %cst_19 = arith.constant dense<0.000000e+00> : vector<8x8xf32>
    %49 = tpu.matmul %48, %21, %cst_19 {dimension_numbers = #tpu.dot_dimension_numbers<[1], [0], [0], [1], [0, 0, 1, 1], [], []>} : vector<8x8xbf16>, vector<8x8xbf16>, vector<8x8xf32> -> vector<8x8xf32>
    %50 = arith.addf %47, %49 : vector<8x8xf32>
    %c1_i32 = arith.constant 1 : i32
    %51 = tpu.reciprocal %45 {approx = true} : vector<8x1xf32> -> vector<8x1xf32>
    %52 = vector.broadcast %51 : vector<8x1xf32> to vector<8x8xf32>
    %53 = arith.mulf %50, %52 : vector<8x8xf32>
    %c0_20 = arith.constant 0 : index
    %c0_21 = arith.constant 0 : index
    %c0_22 = arith.constant 0 : index
    %54 = vector.load %arg9[%c0_20, %c0_21, %c0_22] : memref<1x8x32xf32, #tpu.memory_space<vmem>>, vector<1x8x32xf32>
    %55 = vector.shape_cast %54 : vector<1x8x32xf32> to vector<8x32xf32>
    %56 = arith.truncf %53 : vector<8x8xf32> to vector<8x8xbf16>
    %c0_23 = arith.constant 0 : index
    %c0_24 = arith.constant 0 : index
    %c0_25 = arith.constant 0 : index
    %57 = vector.load %arg7[%c0_23, %c0_24, %c0_25] : memref<1x8x32xbf16, #tpu.memory_space<vmem>>, vector<1x8x32xbf16>
    %58 = vector.shape_cast %57 : vector<1x8x32xbf16> to vector<8x32xbf16>
    %cst_26 = arith.constant dense<0.000000e+00> : vector<8x32xf32>
    %59 = tpu.matmul %56, %58, %cst_26 {dimension_numbers = #tpu.dot_dimension_numbers<[1], [0], [0], [1], [0, 0, 1, 1], [], []>} : vector<8x8xbf16>, vector<8x32xbf16>, vector<8x32xf32> -> vector<8x32xf32>
    %60 = arith.addf %55, %59 : vector<8x32xf32>
    %c0_27 = arith.constant 0 : index
    %c0_28 = arith.constant 0 : index
    %c0_29 = arith.constant 0 : index
    %61 = vector.load %arg9[%c0_27, %c0_28, %c0_29] : memref<1x8x32xf32, #tpu.memory_space<vmem>>, vector<1x8x32xf32>
    %62 = vector.shape_cast %61 : vector<1x8x32xf32> to vector<8x32xf32>
    %63 = vector.shape_cast %60 : vector<8x32xf32> to vector<1x8x32xf32>
    tpu.vector_store %arg9[%c0_27, %c0_28, %c0_29], %63 {strides = array<i32>} : memref<1x8x32xf32, #tpu.memory_space<vmem>>, vector<1x8x32xf32>,
    return
  }
  func.func @transform_0(%arg0: i32, %arg1: i32, %arg2: memref<2xi32, #tpu.memory_space<smem>>) -> (i32, i32, i32) {
    %c0_i32 = arith.constant 0 : i32
    %c0_i32_0 = arith.constant 0 : i32
    %c0_i32_1 = arith.constant 0 : i32
    return %arg0, %c0_i32, %c0_i32_0 : i32, i32, i32
  }
  func.func @transform_1(%arg0: i32, %arg1: i32, %arg2: memref<2xi32, #tpu.memory_space<smem>>) -> (i32, i32, i32, i32) {
    %c0_i32 = arith.constant 0 : i32
    %c0_i32_0 = arith.constant 0 : i32
    %c0_i32_1 = arith.constant 0 : i32
    return %arg0, %arg1, %c0_i32, %c0_i32_0 : i32, i32, i32, i32
  }
  func.func @transform_2(%arg0: i32, %arg1: i32, %arg2: memref<2xi32, #tpu.memory_space<smem>>) -> (i32, i32, i32, i32) {
    %c0_i32 = arith.constant 0 : i32
    %c0_i32_0 = arith.constant 0 : i32
    %c0_i32_1 = arith.constant 0 : i32
    return %arg0, %arg1, %c0_i32, %c0_i32_0 : i32, i32, i32, i32
  }
  func.func @transform_3(%arg0: i32, %arg1: i32, %arg2: memref<2xi32, #tpu.memory_space<smem>>) -> (i32, i32, i32, i32) {
    %c0_i32 = arith.constant 0 : i32
    %c0_i32_0 = arith.constant 0 : i32
    %c0_i32_1 = arith.constant 0 : i32
    return %arg0, %arg1, %c0_i32, %c0_i32_0 : i32, i32, i32, i32
  }
  func.func @transform_4(%arg0: i32, %arg1: i32, %arg2: memref<2xi32, #tpu.memory_space<smem>>) -> (i32, i32, i32) {
    %c0_i32 = arith.constant 0 : i32
    %c0_i32_0 = arith.constant 0 : i32
    %c0_i32_1 = arith.constant 0 : i32
    return %arg1, %c0_i32, %c0_i32_0 : i32, i32, i32
  }
  func.func @transform_5(%arg0: i32, %arg1: i32, %arg2: memref<2xi32, #tpu.memory_space<smem>>) -> (i32, i32) {
    %c0_i32 = arith.constant 0 : i32
    %c0_i32_0 = arith.constant 0 : i32
    %c0_i32_1 = arith.constant 0 : i32
    return %c0_i32, %c0_i32_0 : i32, i32
  }
  func.func @transform_6(%arg0: i32, %arg1: i32, %arg2: memref<2xi32, #tpu.memory_space<smem>>) -> (i32, i32, i32) {
    %c0_i32 = arith.constant 0 : i32
    %c0_i32_0 = arith.constant 0 : i32
    %c0_i32_1 = arith.constant 0 : i32
    return %arg0, %c0_i32, %c0_i32_0 : i32, i32, i32
  }
}

</mosaic_0001>

<llo_original>
// kernel: tpu_custom_call.1
$region0: #{tpu_custom_call.1}
  #allocation0 [shape = 'u32[]', space=smem, size = 0x4, offset = 0x4, fixed_abs, tag = 'smem constant byte address 0x4 - core index']
  #allocation1 [shape = 'u32[144,128]{1,0:T(1,128)}', space=vmem, size = 0x12000, scoped, tag = 'internal scratch']
  %s0 = inlined_call_operand.hbm [shape: f32[16,128], index: 0, kind: input, shape index: {}]
  %s1 = inlined_call_operand.hbm [shape: f32[8,128], index: 1, kind: input, shape index: {}]
  %s2 = inlined_call_operand.hbm [shape: f32[16,128], index: 2, kind: output, shape index: {}]
  %s3 = sld [smem:[#allocation0]]
  $region49: #{tpu_custom_call.1} parent=0
    _
  %s5 = ssub.s32 1, %s3
  %s6 = scalar_select 0, %s5, %s3
  $region1: #{tpu_custom_call.1} parent=0
    #allocation2 [shape = 'u8[8192]{0}', space=vmem, size = 0x2000, scoped, tag = 'input window, operand 0']
    #allocation3 [shape = 's32[2]{0}', space=sflag, size = 0x8, scoped, tag = 'scoped memory for tpu_custom_call.1']
    #allocation4 [shape = 's32[2]{0}', space=sflag, size = 0x8, scoped, tag = 'scoped memory for tpu_custom_call.1']
    #allocation5 [shape = 'u8[4096]{0}', space=vmem, size = 0x1000, scoped, tag = 'input window, operand 1, single buffered']
    #allocation6 [shape = 's32[1]{0}', space=sflag, size = 0x4, scoped, tag = 'scoped memory for tpu_custom_call.1']
    #allocation7 [shape = 'u8[8192]{0}', space=vmem, size = 0x2000, scoped, tag = 'output window, operand 0']
    %7 = vsyncpa [#allocation3], 0
    %s8 = scalar_lea.sflag [#allocation3], 1
    %9 = vsyncpa %s8, 0
    %10 = vsyncpa [#allocation6], 0
    %11 = vsyncpa [#allocation4], 0
    %s12 = scalar_lea.sflag [#allocation4], 1
    %13 = vsyncpa %s12, 0
    loop: start=0, step=1, limit=4
    $region2: #{tpu_custom_call.1} parent=1 // loop_pre_header
      _
    $region3: #{tpu_custom_call.1} parent=1 // loop_header
      %s15 = sphi 0, %s19
      %p16 = scmp.ge.s32.totalorder %s15, 4
      %s25 = sphi 0, %s27
      %s28 = sphi 0, %s25
      %s29 = sphi 0, %s28
      %s45 = sphi 0, %s29
      %s49 = sphi 0, %s49
      %s51 = sphi 0, %s49
      %s52 = sphi 0, %s51
      %s66 = sphi 0, %s52
      %s72 = sphi 0, %s74
      %s75 = sphi 0, %s72
      %s76 = sphi 0, %s75
      %s92 = sphi 0, %s76
    $region4: #{tpu_custom_call.1} parent=1 // loop_header_branch
      %18 = sbr.rel (%p16) target = $region8
    $region5: #{tpu_custom_call.1} parent=1 // loop_body
      %s20 = ssub.s32 %s15, 1
      %s21 = ssub.s32 %s15, 2
      %s22 = sadd.s32 %s15, 1
      %s23 = ssub.s32 %s15, %s22
      %p24 = scmp.eq.s32.totalorder %s23, 0
      %s26 = sadd.s32 %s25, 1
      %s27 = scalar_select %p24, %s25, %s26
      %p30 = pneg %p24
      %p31 = scmp.eq.s32.totalorder %s15, 1
      %p32 = por %p30, %p31
      %p33 = scmp.ne.s32.totalorder %s25, %s28
      %p34 = scmp.eq.s32.totalorder %s15, 0
      %p35 = por %p33, %p34
      %p36 = scmp.ne.s32.totalorder %s25, %s28
      %p37 = scmp.eq.s32.totalorder %s20, 1
      %p38 = por %p36, %p37
      %p39 = scmp.ne.s32.totalorder %s28, %s29
      %p40 = scmp.eq.s32.totalorder %s20, 0
      %p41 = por %p39, %p40
      %p42 = scmp.ne.s32.totalorder %s28, %s29
      %p43 = scmp.eq.s32.totalorder %s21, 1
      %p44 = por %p42, %p43
      %p46 = scmp.ne.s32.totalorder %s29, %s45
      %p47 = scmp.eq.s32.totalorder %s21, 0
      %p48 = por %p46, %p47
      %s50 = sadd.s32 %s49, 1
      %p53 = scmp.eq.s32.totalorder %s15, 1
      %p54 = scmp.ne.s32.totalorder %s49, %s51
      %p55 = scmp.eq.s32.totalorder %s15, 0
      %p56 = por %p54, %p55
      %p57 = scmp.ne.s32.totalorder %s49, %s51
      %p58 = scmp.eq.s32.totalorder %s20, 1
      %p59 = por %p57, %p58
      %p60 = scmp.ne.s32.totalorder %s51, %s52
      %p61 = scmp.eq.s32.totalorder %s20, 0
      %p62 = por %p60, %p61
      %p63 = scmp.ne.s32.totalorder %s51, %s52
      %p64 = scmp.eq.s32.totalorder %s21, 1
      %p65 = por %p63, %p64
      %p67 = scmp.ne.s32.totalorder %s52, %s66
      %p68 = scmp.eq.s32.totalorder %s21, 0
      %p69 = por %p67, %p68
      %s70 = ssub.s32 %s15, %s22
      %p71 = scmp.eq.s32.totalorder %s70, 0
      %s73 = sadd.s32 %s72, 1
      %s74 = scalar_select %p71, %s72, %s73
      %p77 = pneg %p71
      %p78 = scmp.eq.s32.totalorder %s15, 1
      %p79 = por %p77, %p78
      %p80 = scmp.ne.s32.totalorder %s72, %s75
      %p81 = scmp.eq.s32.totalorder %s15, 0
      %p82 = por %p80, %p81
      %p83 = scmp.ne.s32.totalorder %s72, %s75
      %p84 = scmp.eq.s32.totalorder %s20, 1
      %p85 = por %p83, %p84
      %p86 = scmp.ne.s32.totalorder %s75, %s76
      %p87 = scmp.eq.s32.totalorder %s20, 0
      %p88 = por %p86, %p87
      %p89 = scmp.ne.s32.totalorder %s75, %s76
      %p90 = scmp.eq.s32.totalorder %s21, 1
      %p91 = por %p89, %p90
      %p93 = scmp.ne.s32.totalorder %s76, %s92
      %p94 = scmp.eq.s32.totalorder %s21, 0
      %p95 = por %p93, %p94
      %p96 = scmp.le.s32.totalorder 1, %s15
      %p97 = scmp.lt.s32.totalorder %s15, 3
      %p98 = pnand %p96, %p97
      %p99 = pneg %p98
      // Predicated region
      $region9: #{tpu_custom_call.1} parent=5 // pred_check
        _
      $region10: #{tpu_custom_call.1} parent=5 // pred_check_branch
        %101 = sbr.rel (%p98) target = $region12
      $region11: #{tpu_custom_call.1} parent=5 // pred_region
        %s102 = ssub.s32 %s15, 1
        // Predicated region
        $region13: #{tpu_custom_call.1} parent=11 // pred_check
          %p103 = pneg %p62
        $region14: #{tpu_custom_call.1} parent=11 // pred_check_branch
          %105 = sbr.rel (%p103) target = $region16
        $region15: #{tpu_custom_call.1} parent=11 // pred_region
          %s107 = ssub.s32 128, 128
          %108 = vsyncadd [#allocation6], %s107
          %s110 = sshll.u32 [#allocation5], 4
          %s111 = int_to_ptr.vmem [resolvable:$true] %s110
          %113 = dma.hbm_to_vmem [thread:$0]  %s1, 128, %s111, [#allocation6]
        $region16: #{tpu_custom_call.1} parent=11 // pred_fallthru
          _
      $region12: #{tpu_custom_call.1} parent=5 // pred_fallthru
        _
      %p114 = scmp.lt.s32.totalorder %s15, 2
      // Predicated region
      $region17: #{tpu_custom_call.1} parent=5 // pred_check
        %p115 = pneg %p114
      $region18: #{tpu_custom_call.1} parent=5 // pred_check_branch
        %117 = sbr.rel (%p115) target = $region20
      $region19: #{tpu_custom_call.1} parent=5 // pred_region
        // Predicated region
        $region21: #{tpu_custom_call.1} parent=19 // pred_check
          %p118 = pneg %p35
        $region22: #{tpu_custom_call.1} parent=19 // pred_check_branch
          %120 = sbr.rel (%p118) target = $region24
        $region23: #{tpu_custom_call.1} parent=19 // pred_region
          %s121 = sand.u32 %s25, 1
          %s122 = scalar_lea.sflag [#allocation3], %s121
          %s123 = sand.u32 %s25, 1
          %s124 = smul.addr %s123, 8
          %s125 = scalar_lea.vmem [#allocation2], %s124
          %s127 = ssub.s32 128, 128
          %128 = vsyncadd %s122, %s127
          %s129 = smul.addr %s15, 128
          %s130 = scalar_lea.hbm %s0, %s129
          %s132 = sshll.u32 %s125, 4
          %s133 = int_to_ptr.vmem [resolvable:$true] %s132
          %135 = dma.hbm_to_vmem [thread:$0]  %s130, 128, %s133, %s122
        $region24: #{tpu_custom_call.1} parent=19 // pred_fallthru
          _
      $region20: #{tpu_custom_call.1} parent=5 // pred_fallthru
        _
      %p136 = scmp.le.s32.totalorder 1, %s15
      %p137 = scmp.lt.s32.totalorder %s15, 3
      %p138 = pnand %p136, %p137
      %p139 = pneg %p138
      // Predicated region
      $region25: #{tpu_custom_call.1} parent=5 // pred_check
        _
      $region26: #{tpu_custom_call.1} parent=5 // pred_check_branch
        %141 = sbr.rel (%p138) target = $region28
      $region27: #{tpu_custom_call.1} parent=5 // pred_region
        %s142 = ssub.s32 %s15, 1
        %s143 = sand.u32 %s28, 1
        %s144 = scalar_lea.sflag [#allocation3], %s143
        %s145 = sand.u32 %s28, 1
        %s146 = smul.addr %s145, 8
        %s147 = scalar_lea.vmem [#allocation2], %s146
        // Predicated region
        $region29: #{tpu_custom_call.1} parent=27 // pred_check
          %p148 = pneg %p41
        $region30: #{tpu_custom_call.1} parent=27 // pred_check_branch
          %150 = sbr.rel (%p148) target = $region32
        $region31: #{tpu_custom_call.1} parent=27 // pred_region
          %151 = dma.done %s144, 128
        $region32: #{tpu_custom_call.1} parent=27 // pred_fallthru
          _
        // Predicated region
        $region33: #{tpu_custom_call.1} parent=27 // pred_check
          %p152 = pneg %p62
        $region34: #{tpu_custom_call.1} parent=27 // pred_check_branch
          %154 = sbr.rel (%p152) target = $region36
        $region35: #{tpu_custom_call.1} parent=27 // pred_region
          %155 = dma.done [#allocation6], 128
        $region36: #{tpu_custom_call.1} parent=27 // pred_fallthru
          _
        %s156 = sand.u32 %s28, 1
        %s157 = scalar_lea.sflag [#allocation3], %s156
        %s158 = sand.u32 %s28, 1
        %s159 = smul.addr %s158, 8
        %s160 = scalar_lea.vmem [#allocation2], %s159
        %p161 = pneg %p41
        %p162 = pneg %p38
        %p163 = pneg %p62
        %p164 = pneg %p59
        %p165 = pneg %p88
        %p166 = pneg %p85
        %s167 = sand.u32 %s75, 1
        %s168 = scalar_lea.sflag [#allocation4], %s167
        %s169 = sand.u32 %s75, 1
        %s170 = smul.addr %s169, 8
        %s171 = scalar_lea.vmem [#allocation7], %s170
        %v172 = vld [vmem:[%s147] sm:$0xff]
        %v173 = vld [vmem:[#allocation5] sm:$0xff]
        %v174 = vadd.f32 %v172, %v173
        %175 = vst [vmem:[%s171] sm:$0xff] %v174
        %s176 = sand.u32 %s75, 1
        %s177 = scalar_lea.sflag [#allocation4], %s176
        %s178 = sand.u32 %s75, 1
        %s179 = smul.addr %s178, 8
        %s180 = scalar_lea.vmem [#allocation7], %s179
        // Predicated region
        $region37: #{tpu_custom_call.1} parent=27 // pred_check
          %p181 = pneg %p85
        $region38: #{tpu_custom_call.1} parent=27 // pred_check_branch
          %183 = sbr.rel (%p181) target = $region40
        $region39: #{tpu_custom_call.1} parent=27 // pred_region
          %s185 = ssub.s32 128, 128
          %186 = vsyncadd %s177, %s185
          %s187 = smul.addr %s20, 128
          %s188 = scalar_lea.hbm %s2, %s187
          %s190 = sshll.u32 %s180, 4
          %s191 = int_to_ptr.vmem [resolvable:$true] %s190
          %193 = dma.vmem_to_hbm [thread:$0]  %s191, 128, %s188, %s177
        $region40: #{tpu_custom_call.1} parent=27 // pred_fallthru
          _
      $region28: #{tpu_custom_call.1} parent=5 // pred_fallthru
        _
      %p194 = scmp.le.s32.totalorder 2, %s15
      // Predicated region
      $region41: #{tpu_custom_call.1} parent=5 // pred_check
        %p195 = pneg %p194
      $region42: #{tpu_custom_call.1} parent=5 // pred_check_branch
        %197 = sbr.rel (%p195) target = $region44
      $region43: #{tpu_custom_call.1} parent=5 // pred_region
        %s198 = ssub.s32 %s15, 2
        // Predicated region
        $region45: #{tpu_custom_call.1} parent=43 // pred_check
          %p199 = pneg %p91
        $region46: #{tpu_custom_call.1} parent=43 // pred_check_branch
          %201 = sbr.rel (%p199) target = $region48
        $region47: #{tpu_custom_call.1} parent=43 // pred_region
          %s202 = sand.u32 %s76, 1
          %s203 = scalar_lea.sflag [#allocation4], %s202
          %s204 = sand.u32 %s76, 1
          %s205 = smul.addr %s204, 8
          %s206 = scalar_lea.vmem [#allocation7], %s205
          %207 = dma.done %s203, 128
        $region48: #{tpu_custom_call.1} parent=43 // pred_fallthru
          _
      $region44: #{tpu_custom_call.1} parent=5 // pred_fallthru
        _
    $region6: #{tpu_custom_call.1} parent=1 // loop_footer
      %s19 = sadd.s32 1, %s15
    $region7: #{tpu_custom_call.1} parent=1 // loop_footer_branch
      %14 = sbr.rel target = $region3
    $region8: #{tpu_custom_call.1} parent=1 // loop_exit
      _
    %208 = vsyncpa [#allocation3], 1
    %s209 = scalar_lea.sflag [#allocation3], 1
    %210 = vsyncpa %s209, 1
    %211 = vsyncpa [#allocation6], 1
    %212 = vsyncpa [#allocation4], 1
    %s213 = scalar_lea.sflag [#allocation4], 1
    %214 = vsyncpa %s213, 1

// kernel: xeus_encoder_forward.8
$region0: #{xeus_encoder_forward.8}
  #allocation0 [shape = 'u32[]', space=smem, size = 0x4, offset = 0x4, fixed_abs, tag = 'smem constant byte address 0x4 - core index']
  #allocation1 [shape = 'u32[144,128]{1,0:T(1,128)}', space=vmem, size = 0x12000, scoped, tag = 'internal scratch']
  %s0 = inlined_call_operand.hbm [shape: f32[16,32], index: 0, kind: input, shape index: {}]
  %s1 = inlined_call_operand.hbm [shape: f32[1,32], index: 1, kind: input, shape index: {}]
  %s2 = inlined_call_operand.hbm [shape: f32[1,32], index: 2, kind: input, shape index: {}]
  %s3 = inlined_call_operand.hbm [shape: bf16[32,96], index: 3, kind: input, shape index: {}]
  %s4 = inlined_call_operand.hbm [shape: f32[1,96], index: 4, kind: input, shape index: {}]
  %s5 = inlined_call_operand.hbm [shape: bf16[16,96], index: 5, kind: output, shape index: {}]
  %s6 = sld [smem:[#allocation0]]
  $region50: #{xeus_encoder_forward.8} parent=0
    _
  %s8 = ssub.s32 1, %s6
  %s9 = scalar_select 0, %s8, %s6
  $region1: #{xeus_encoder_forward.8} parent=0
    #allocation2 [shape = 'u8[8192]{0}', space=vmem, size = 0x2000, scoped, tag = 'input window, operand 0, single buffered']
    #allocation3 [shape = 's32[1]{0}', space=sflag, size = 0x4, scoped, tag = 'scoped memory for xeus_encoder_forward.8']
    #allocation4 [shape = 's32[1]{0}', space=sflag, size = 0x4, scoped, tag = 'scoped memory for xeus_encoder_forward.8']
    #allocation5 [shape = 'u8[512]{0}', space=vmem, size = 0x400, scoped, tag = 'input window, operand 1, single buffered']
    #allocation6 [shape = 's32[1]{0}', space=sflag, size = 0x4, scoped, tag = 'scoped memory for xeus_encoder_forward.8']
    #allocation7 [shape = 'u8[512]{0}', space=vmem, size = 0x400, scoped, tag = 'input window, operand 2, single buffered']
    #allocation8 [shape = 'u8[8192]{0}', space=vmem, size = 0x2000, scoped, tag = 'input window, operand 3, single buffered']
    #allocation9 [shape = 's32[1]{0}', space=sflag, size = 0x4, scoped, tag = 'scoped memory for xeus_encoder_forward.8']
    #allocation10 [shape = 'u8[512]{0}', space=vmem, size = 0x400, scoped, tag = 'input window, operand 4, single buffered']
    #allocation11 [shape = 'u8[4096]{0}', space=vmem, size = 0x1000, scoped, tag = 'output window, operand 0, single buffered']
    %10 = vsyncpa [#allocation3], 0
    %11 = vsyncpa [#allocation6], 0
    %12 = vsyncpa [#allocation9], 0
    %13 = vsyncpa [#allocation4], 0
    // Predicated region
    $region2: #{xeus_encoder_forward.8} parent=1 // pred_check
      _
    $region3: #{xeus_encoder_forward.8} parent=1 // pred_check_branch
      %15 = sbr.rel (0) target = $region5
    $region4: #{xeus_encoder_forward.8} parent=1 // pred_region
      %s17 = ssub.s32 256, 256
      %18 = vsyncadd [#allocation3], %s17
      %s19 = sshll.u32 [#allocation2], 4
      %s20 = int_to_ptr.vmem [resolvable:$true] %s19
      %25 = dma.hbm_to_vmem [thread:$0]  %s0, 256, %s20, [#allocation3], 128, 128, 8
    $region5: #{xeus_encoder_forward.8} parent=1 // pred_fallthru
      _
    // Predicated region
    $region6: #{xeus_encoder_forward.8} parent=1 // pred_check
      _
    $region7: #{xeus_encoder_forward.8} parent=1 // pred_check_branch
      %27 = sbr.rel (0) target = $region9
    $region8: #{xeus_encoder_forward.8} parent=1 // pred_region
      %s29 = ssub.s32 16, 16
      %30 = vsyncadd [#allocation6], %s29
      %s32 = sshll.u32 [#allocation5], 4
      %s33 = int_to_ptr.vmem [resolvable:$true] %s32
      %35 = dma.hbm_to_vmem [thread:$0]  %s1, 16, %s33, [#allocation6]
    $region9: #{xeus_encoder_forward.8} parent=1 // pred_fallthru
      _
    // Predicated region
    $region10: #{xeus_encoder_forward.8} parent=1 // pred_check
      _
    $region11: #{xeus_encoder_forward.8} parent=1 // pred_check_branch
      %37 = sbr.rel (0) target = $region13
    $region12: #{xeus_encoder_forward.8} parent=1 // pred_region
      %s39 = ssub.s32 16, 16
      %40 = vsyncadd [#allocation6], %s39
      %s42 = sshll.u32 [#allocation7], 4
      %s43 = int_to_ptr.vmem [resolvable:$true] %s42
      %45 = dma.hbm_to_vmem [thread:$0]  %s2, 16, %s43, [#allocation6]
    $region13: #{xeus_encoder_forward.8} parent=1 // pred_fallthru
      _
    // Predicated region
    $region14: #{xeus_encoder_forward.8} parent=1 // pred_check
      _
    $region15: #{xeus_encoder_forward.8} parent=1 // pred_check_branch
      %47 = sbr.rel (0) target = $region17
    $region16: #{xeus_encoder_forward.8} parent=1 // pred_region
      %s49 = ssub.s32 256, 256
      %50 = vsyncadd [#allocation9], %s49
      %s51 = sshll.u32 [#allocation8], 4
      %s52 = int_to_ptr.vmem [resolvable:$true] %s51
      %57 = dma.hbm_to_vmem [thread:$0]  %s3, 256, %s52, [#allocation9], 64, 64, 4
    $region17: #{xeus_encoder_forward.8} parent=1 // pred_fallthru
      _
    // Predicated region
    $region18: #{xeus_encoder_forward.8} parent=1 // pred_check
      _
    $region19: #{xeus_encoder_forward.8} parent=1 // pred_check_branch
      %59 = sbr.rel (0) target = $region21
    $region20: #{xeus_encoder_forward.8} parent=1 // pred_region
      %s61 = ssub.s32 16, 16
      %62 = vsyncadd [#allocation9], %s61
      %s64 = sshll.u32 [#allocation10], 4
      %s65 = int_to_ptr.vmem [resolvable:$true] %s64
      %67 = dma.hbm_to_vmem [thread:$0]  %s4, 16, %s65, [#allocation9]
    $region21: #{xeus_encoder_forward.8} parent=1 // pred_fallthru
      _
    // Predicated region
    $region22: #{xeus_encoder_forward.8} parent=1 // pred_check
      _
    $region23: #{xeus_encoder_forward.8} parent=1 // pred_check_branch
      %69 = sbr.rel (0) target = $region25
    $region24: #{xeus_encoder_forward.8} parent=1 // pred_region
      %70 = dma.done [#allocation3], 256
    $region25: #{xeus_encoder_forward.8} parent=1 // pred_fallthru
      _
    // Predicated region
    $region26: #{xeus_encoder_forward.8} parent=1 // pred_check
      _
    $region27: #{xeus_encoder_forward.8} parent=1 // pred_check_branch
      %72 = sbr.rel (0) target = $region29
    $region28: #{xeus_encoder_forward.8} parent=1 // pred_region
      %73 = dma.done [#allocation6], 16
    $region29: #{xeus_encoder_forward.8} parent=1 // pred_fallthru
      _
    // Predicated region
    $region30: #{xeus_encoder_forward.8} parent=1 // pred_check
      _
    $region31: #{xeus_encoder_forward.8} parent=1 // pred_check_branch
      %75 = sbr.rel (0) target = $region33
    $region32: #{xeus_encoder_forward.8} parent=1 // pred_region
      %76 = dma.done [#allocation6], 16
    $region33: #{xeus_encoder_forward.8} parent=1 // pred_fallthru
      _
    // Predicated region
    $region34: #{xeus_encoder_forward.8} parent=1 // pred_check
      _
    $region35: #{xeus_encoder_forward.8} parent=1 // pred_check_branch
      %78 = sbr.rel (0) target = $region37
    $region36: #{xeus_encoder_forward.8} parent=1 // pred_region
      %79 = dma.done [#allocation9], 256
    $region37: #{xeus_encoder_forward.8} parent=1 // pred_fallthru
      _
    // Predicated region
    $region38: #{xeus_encoder_forward.8} parent=1 // pred_check
      _
    $region39: #{xeus_encoder_forward.8} parent=1 // pred_check_branch
      %81 = sbr.rel (0) target = $region41
    $region40: #{xeus_encoder_forward.8} parent=1 // pred_region
      %82 = dma.done [#allocation9], 16
    $region41: #{xeus_encoder_forward.8} parent=1 // pred_fallthru
      _
    %v84 = vld [vmem:[#allocation2] sm:$0xff]
    %v85 = vld [vmem:[#allocation2 + $0x8] sm:$0xff]
    %vm86 = vcmask 261120
    %v87 = vsel %vm86, %v84, 0.0
    %88 = vadd.xlane.f32.xlu0 %v87
    %v89 = vpop.xlane.xlu0 %88
    %v90 = vsel %vm86, %v85, 0.0
    %91 = vadd.xlane.f32.xlu0 %v90
    %v92 = vpop.xlane.xlu0 %91
    %v93 = vrcp.pop 32.0
    %v94 = vmul.f32 %v89, %v93
    %v95 = vmul.f32 %v92, %v93
    %v96 = vsub.f32 %v84, %v94
    %v97 = vsub.f32 %v85, %v95
    %v98 = vmul.f32 %v96, %v96
    %v99 = vmul.f32 %v97, %v97
    %v100 = vsel %vm86, %v98, 0.0
    %101 = vadd.xlane.f32.xlu0 %v100
    %v102 = vpop.xlane.xlu0 %101
    %v103 = vsel %vm86, %v99, 0.0
    %104 = vadd.xlane.f32.xlu0 %v103
    %v105 = vpop.xlane.xlu0 %104
    %v106 = vmul.f32 %v102, %v93
    %v107 = vmul.f32 %v105, %v93
    %v108 = vadd.f32 %v106, 1e-05
    %v109 = vadd.f32 %v107, 1e-05
    %v110 = vrsqrt.pop %v108
    %v111 = vrsqrt.pop %v109
    %v112 = vmul.f32 %v96, %v110
    %v113 = vmul.f32 %v97, %v111
    %v114 = vld [vmem:[#allocation5] sm:$0x1]
    %v116 = vlaneseq
    %v117 = vshrl.u32 %v116, 7
    %v118 = vsub.s32 0, %v117
    %v119 = vrot.slane %v114, %v118
    %v121 = vmul.f32 %v112, %v119
    %v122 = vmul.f32 %v113, %v119
    %v123 = vld [vmem:[#allocation7] sm:$0x1]
    %v125 = vlaneseq
    %v126 = vshrl.u32 %v125, 7
    %v127 = vsub.s32 0, %v126
    %v128 = vrot.slane %v123, %v127
    %v130 = vadd.f32 %v121, %v128
    %v131 = vadd.f32 %v122, %v128
    %v132 = vpack.c.bf16 %v131, %v130
    %v133 = vld [vmem:[#allocation8] sm:$0xf]
    %v134 = vld [vmem:[#allocation8 + $0x4] sm:$0xf]
    %v135 = vld [vmem:[#allocation8 + $0x8] sm:$0xf]
    %v136 = vld [vmem:[#allocation8 + $0xc] sm:$0xf]
    %v137 = vld [vmem:[#allocation10] sm:$0x1]
    %v139 = vlaneseq
    %v140 = vshrl.u32 %v139, 7
    %v141 = vsub.s32 0, %v140
    %v142 = vrot.slane %v137, %v141
    %v148 = vunpack.c.l.b16 %v133
    %v149 = vunpack.c.l.b16 %v134
    %v150 = vunpack.c.l.b16 %v135
    %v151 = vunpack.c.l.b16 %v136
    %v152 = vpack.c.b16 %v149, %v148
    %v153 = vpack.c.b16 %v151, %v150
    %v157 = vsel %vm86, %v132, 0
    %159 = vmatprep.subr.bf16.mxu0 0
    %160 = vmatpush1.bf16.msra.mxu0 %v152
    %161 = vmatprep.subr.bf16.mxu0 0
    %162 = vmatpush1.bf16.msra.mxu0 %v153
    %163 = vmatprep.subr.bf16.mxu0 0
    %164 = vmatpush1.bf16.msra.mxu0 0
    %165 = vmatprep.subr.bf16.mxu0 0
    %166 = vmatpush1.bf16.msra.mxu0 0
    %167 = vmatprep.subr.bf16.mxu0 0
    %168 = vmatpush1.bf16.msra.mxu0 0
    %169 = vmatprep.subr.bf16.mxu0 0
    %170 = vmatpush1.bf16.msra.mxu0 0
    %171 = vmatprep.subr.bf16.mxu0 0
    %172 = vmatpush1.bf16.msra.mxu0 0
    %173 = vmatprep.subr.bf16.mxu0 0
    %174 = vmatpush1.bf16.msra.mxu0 0
    %175 = vmatprep.subr.bf16.mxu0 0
    %176 = vmatpush1.bf16.msra.mxu0 0
    %177 = vmatprep.subr.bf16.mxu0 0
    %178 = vmatpush1.bf16.msra.mxu0 0
    %179 = vmatprep.subr.bf16.mxu0 0
    %180 = vmatpush1.bf16.msra.mxu0 0
    %181 = vmatprep.subr.bf16.mxu0 0
    %182 = vmatpush1.bf16.msra.mxu0 0
    %183 = vmatprep.subr.bf16.mxu0 0
    %184 = vmatpush1.bf16.msra.mxu0 0
    %185 = vmatprep.subr.bf16.mxu0 0
    %186 = vmatpush1.bf16.msra.mxu0 0
    %187 = vmatprep.subr.bf16.mxu0 0
    %188 = vmatpush1.bf16.msra.mxu0 0
    %189 = vmatprep.subr.bf16.mxu0 0
    %190 = vmatpush1.bf16.msra.mxu0 0
    %191 = vmatprep.mubr.bf16.mxu0 0
    %192 = vmatmul.mubr.bf16.gmra.mrb[0].mxu0 %v157
    %v193 = vpop.f32.mrb[0].mxu0
    %v194 = vadd.f32 %v142, %v193
    %v195 = vpop.f32.mrb[0].mxu0
    %v196 = vpop.f32.mrb[0].mxu0
    %v197 = vadd.f32 %v142, %v196
    %v198 = vpop.f32.mrb[0].mxu0
    %199 = vdwg.mxu0
    %v200 = vpack.c.bf16 %v197, %v194
    %v202 = vunpack.c.l.b16 %v200
    %v203 = vunpack.c.h.b16 %v200
    %v204 = vpack.c.b16 %v202, %v202
    %v205 = vpack.c.b16 %v203, %v203
    %vm208 = vcmask 781312
    %209 = vst.msk [vmem:[#allocation11] sm:$0xf] %vm208, %v204
    %210 = vst.msk [vmem:[#allocation11 + $0x4] sm:$0xf] %vm208, %v205
    // Predicated region
    $region42: #{xeus_encoder_forward.8} parent=1 // pred_check
      _
    $region43: #{xeus_encoder_forward.8} parent=1 // pred_check_branch
      %212 = sbr.rel (0) target = $region45
    $region44: #{xeus_encoder_forward.8} parent=1 // pred_region
      %s214 = ssub.s32 128, 128
      %215 = vsyncadd [#allocation4], %s214
      %s216 = sshll.u32 [#allocation11], 4
      %s217 = int_to_ptr.vmem [resolvable:$true] %s216
      %222 = dma.vmem_to_hbm [thread:$0]  %s217, 128, %s5, [#allocation4], 64, 64, 4
    $region45: #{xeus_encoder_forward.8} parent=1 // pred_fallthru
      _
    // Predicated region
    $region46: #{xeus_encoder_forward.8} parent=1 // pred_check
      _
    $region47: #{xeus_encoder_forward.8} parent=1 // pred_check_branch
      %224 = sbr.rel (0) target = $region49
    $region48: #{xeus_encoder_forward.8} parent=1 // pred_region
      %225 = dma.done [#allocation4], 128
    $region49: #{xeus_encoder_forward.8} parent=1 // pred_fallthru
      _
    %226 = vsyncpa [#allocation3], 1
    %227 = vsyncpa [#allocation6], 1
    %228 = vsyncpa [#allocation9], 1
    %229 = vsyncpa [#allocation4], 1

// kernel: xeus_encoder_forward.7
$region0: #{xeus_encoder_forward.7}
  #allocation0 [shape = 'u32[]', space=smem, size = 0x4, offset = 0x4, fixed_abs, tag = 'smem constant byte address 0x4 - core index']
  #allocation1 [shape = 'u32[144,128]{1,0:T(1,128)}', space=vmem, size = 0x12000, scoped, tag = 'internal scratch']
  #allocation2 [shape = 'f32[16,32]{1,0:T(8,128)}', space=vmem, size = 0x2000, scoped, tag = 'scratch operand']
  %s0 = inlined_call_operand.hbm [shape: bf16[16,16], index: 0, kind: input, shape index: {}]
  %s1 = inlined_call_operand.hbm [shape: bf16[16,32], index: 1, kind: input, shape index: {}]
  %s2 = inlined_call_operand.hbm [shape: f32[1,32], index: 2, kind: input, shape index: {}]
  %s3 = inlined_call_operand.hbm [shape: f32[16,32], index: 3, kind: output, shape index: {}]
  %s4 = sld [smem:[#allocation0]]
  $region42: #{xeus_encoder_forward.7} parent=0
    _
  %s6 = ssub.s32 1, %s4
  %s7 = scalar_select 0, %s6, %s4
  $region1: #{xeus_encoder_forward.7} parent=0
    #allocation3 [shape = 'u8[4096]{0}', space=vmem, size = 0x1000, scoped, tag = 'input window, operand 0, single buffered']
    #allocation4 [shape = 's32[1]{0}', space=sflag, size = 0x4, scoped, tag = 'scoped memory for xeus_encoder_forward.7']
    #allocation5 [shape = 's32[1]{0}', space=sflag, size = 0x4, scoped, tag = 'scoped memory for xeus_encoder_forward.7']
    #allocation6 [shape = 'u8[4096]{0}', space=vmem, size = 0x1000, scoped, tag = 'input window, operand 1, single buffered']
    #allocation7 [shape = 's32[1]{0}', space=sflag, size = 0x4, scoped, tag = 'scoped memory for xeus_encoder_forward.7']
    #allocation8 [shape = 'u8[512]{0}', space=vmem, size = 0x400, scoped, tag = 'input window, operand 2, single buffered']
    #allocation9 [shape = 'u8[8192]{0}', space=vmem, size = 0x2000, scoped, tag = 'output window, operand 0, single buffered']
    %8 = vsyncpa [#allocation4], 0
    %9 = vsyncpa [#allocation7], 0
    %10 = vsyncpa [#allocation5], 0
    // Predicated region
    $region2: #{xeus_encoder_forward.7} parent=1 // pred_check
      _
    $region3: #{xeus_encoder_forward.7} parent=1 // pred_check_branch
      %12 = sbr.rel (0) target = $region5
    $region4: #{xeus_encoder_forward.7} parent=1 // pred_region
      %s14 = ssub.s32 128, 128
      %15 = vsyncadd [#allocation4], %s14
      %s16 = sshll.u32 [#allocation3], 4
      %s17 = int_to_ptr.vmem [resolvable:$true] %s16
      %22 = dma.hbm_to_vmem [thread:$0]  %s0, 128, %s17, [#allocation4], 64, 64, 4
    $region5: #{xeus_encoder_forward.7} parent=1 // pred_fallthru
      _
    // Predicated region
    $region6: #{xeus_encoder_forward.7} parent=1 // pred_check
      _
    $region7: #{xeus_encoder_forward.7} parent=1 // pred_check_branch
      %24 = sbr.rel (0) target = $region9
    $region8: #{xeus_encoder_forward.7} parent=1 // pred_region
      %s26 = ssub.s32 128, 128
      %27 = vsyncadd [#allocation7], %s26
      %s28 = sshll.u32 [#allocation6], 4
      %s29 = int_to_ptr.vmem [resolvable:$true] %s28
      %34 = dma.hbm_to_vmem [thread:$0]  %s1, 128, %s29, [#allocation7], 64, 64, 4
    $region9: #{xeus_encoder_forward.7} parent=1 // pred_fallthru
      _
    // Predicated region
    $region10: #{xeus_encoder_forward.7} parent=1 // pred_check
      _
    $region11: #{xeus_encoder_forward.7} parent=1 // pred_check_branch
      %36 = sbr.rel (0) target = $region13
    $region12: #{xeus_encoder_forward.7} parent=1 // pred_region
      %s38 = ssub.s32 16, 16
      %39 = vsyncadd [#allocation7], %s38
      %s41 = sshll.u32 [#allocation8], 4
      %s42 = int_to_ptr.vmem [resolvable:$true] %s41
      %44 = dma.hbm_to_vmem [thread:$0]  %s2, 16, %s42, [#allocation7]
    $region13: #{xeus_encoder_forward.7} parent=1 // pred_fallthru
      _
    // Predicated region
    $region14: #{xeus_encoder_forward.7} parent=1 // pred_check
      _
    $region15: #{xeus_encoder_forward.7} parent=1 // pred_check_branch
      %46 = sbr.rel (0) target = $region17
    $region16: #{xeus_encoder_forward.7} parent=1 // pred_region
      %47 = dma.done [#allocation4], 128
    $region17: #{xeus_encoder_forward.7} parent=1 // pred_fallthru
      _
    // Predicated region
    $region18: #{xeus_encoder_forward.7} parent=1 // pred_check
      _
    $region19: #{xeus_encoder_forward.7} parent=1 // pred_check_branch
      %49 = sbr.rel (0) target = $region21
    $region20: #{xeus_encoder_forward.7} parent=1 // pred_region
      %50 = dma.done [#allocation7], 128
    $region21: #{xeus_encoder_forward.7} parent=1 // pred_fallthru
      _
    // Predicated region
    $region22: #{xeus_encoder_forward.7} parent=1 // pred_check
      _
    $region23: #{xeus_encoder_forward.7} parent=1 // pred_check_branch
      %52 = sbr.rel (0) target = $region25
    $region24: #{xeus_encoder_forward.7} parent=1 // pred_region
      %53 = dma.done [#allocation7], 16
    $region25: #{xeus_encoder_forward.7} parent=1 // pred_fallthru
      _
    %p55 = scmp.eq.s32.totalorder 0, 0
    // Predicated region
    $region26: #{xeus_encoder_forward.7} parent=1 // pred_check
      %p56 = pneg %p55
    $region27: #{xeus_encoder_forward.7} parent=1 // pred_check_branch
      %58 = sbr.rel (%p56) target = $region29
    $region28: #{xeus_encoder_forward.7} parent=1 // pred_region
      %vm59 = vcmask 261120
      %60 = vst.msk [vmem:[#allocation2] sm:$0xff] %vm59, 0.0
      %61 = vst.msk [vmem:[#allocation2 + $0x8] sm:$0xff] %vm59, 0.0
    $region29: #{xeus_encoder_forward.7} parent=1 // pred_fallthru
      _
    %v62 = vld [vmem:[#allocation2] sm:$0xff]
    %v63 = vld [vmem:[#allocation2 + $0x8] sm:$0xff]
    %v64 = vld [vmem:[#allocation3] sm:$0xf]
    %v65 = vld [vmem:[#allocation3 + $0x4] sm:$0xf]
    %v66 = vld [vmem:[#allocation6] sm:$0xf]
    %v67 = vld [vmem:[#allocation6 + $0x4] sm:$0xf]
    %v70 = vunpack.c.l.b16 %v64
    %v71 = vunpack.c.l.b16 %v65
    %v72 = vpack.c.b16 %v71, %v70
    %v75 = vunpack.c.l.b16 %v66
    %v76 = vunpack.c.l.b16 %v67
    %v77 = vpack.c.b16 %v76, %v75
    %vm79 = vcmask 130048
    %v81 = vsel %vm79, %v72, 0
    %83 = vmatprep.subr.bf16.mxu0 0
    %84 = vmatpush1.bf16.msra.mxu0 %v77
    %85 = vmatprep.subr.bf16.mxu0 0
    %86 = vmatpush1.bf16.msra.mxu0 0
    %87 = vmatprep.subr.bf16.mxu0 0
    %88 = vmatpush1.bf16.msra.mxu0 0
    %89 = vmatprep.subr.bf16.mxu0 0
    %90 = vmatpush1.bf16.msra.mxu0 0
    %91 = vmatprep.subr.bf16.mxu0 0
    %92 = vmatpush1.bf16.msra.mxu0 0
    %93 = vmatprep.subr.bf16.mxu0 0
    %94 = vmatpush1.bf16.msra.mxu0 0
    %95 = vmatprep.subr.bf16.mxu0 0
    %96 = vmatpush1.bf16.msra.mxu0 0
    %97 = vmatprep.subr.bf16.mxu0 0
    %98 = vmatpush1.bf16.msra.mxu0 0
    %99 = vmatprep.subr.bf16.mxu0 0
    %100 = vmatpush1.bf16.msra.mxu0 0
    %101 = vmatprep.subr.bf16.mxu0 0
    %102 = vmatpush1.bf16.msra.mxu0 0
    %103 = vmatprep.subr.bf16.mxu0 0
    %104 = vmatpush1.bf16.msra.mxu0 0
    %105 = vmatprep.subr.bf16.mxu0 0
    %106 = vmatpush1.bf16.msra.mxu0 0
    %107 = vmatprep.subr.bf16.mxu0 0
    %108 = vmatpush1.bf16.msra.mxu0 0
    %109 = vmatprep.subr.bf16.mxu0 0
    %110 = vmatpush1.bf16.msra.mxu0 0
    %111 = vmatprep.subr.bf16.mxu0 0
    %112 = vmatpush1.bf16.msra.mxu0 0
    %113 = vmatprep.subr.bf16.mxu0 0
    %114 = vmatpush1.bf16.msra.mxu0 0
    %115 = vmatprep.mubr.bf16.mxu0 0
    %116 = vmatmul.mubr.bf16.gmra.mrb[0].mxu0 %v81
    %v117 = vpop.f32.mrb[0].mxu0
    %v118 = vadd.f32 0.0, %v117
    %v119 = vpop.f32.mrb[0].mxu0
    %v120 = vpop.f32.mrb[0].mxu0
    %v121 = vadd.f32 0.0, %v120
    %v122 = vpop.f32.mrb[0].mxu0
    %123 = vdwg.mxu0
    %v124 = vadd.f32 %v62, %v118
    %v125 = vadd.f32 %v63, %v121
    %vm126 = vcmask 261120
    %127 = vst.msk [vmem:[#allocation2] sm:$0xff] %vm126, %v124
    %128 = vst.msk [vmem:[#allocation2 + $0x8] sm:$0xff] %vm126, %v125
    // Predicated region
    $region30: #{xeus_encoder_forward.7} parent=1 // pred_check
      %p129 = pneg %p55
    $region31: #{xeus_encoder_forward.7} parent=1 // pred_check_branch
      %131 = sbr.rel (%p129) target = $region33
    $region32: #{xeus_encoder_forward.7} parent=1 // pred_region
      %v132 = vld [vmem:[#allocation2] sm:$0xff]
      %v133 = vld [vmem:[#allocation2 + $0x8] sm:$0xff]
      %v134 = vld [vmem:[#allocation8] sm:$0x1]
      %v136 = vlaneseq
      %v137 = vshrl.u32 %v136, 7
      %v138 = vsub.s32 0, %v137
      %v139 = vrot.slane %v134, %v138
      %v141 = vadd.f32 %v132, %v139
      %v142 = vadd.f32 %v133, %v139
      %143 = vst.msk [vmem:[#allocation9] sm:$0xff] %vm126, %v141
      %144 = vst.msk [vmem:[#allocation9 + $0x8] sm:$0xff] %vm126, %v142
    $region33: #{xeus_encoder_forward.7} parent=1 // pred_fallthru
      _
    // Predicated region
    $region34: #{xeus_encoder_forward.7} parent=1 // pred_check
      _
    $region35: #{xeus_encoder_forward.7} parent=1 // pred_check_branch
      %146 = sbr.rel (0) target = $region37
    $region36: #{xeus_encoder_forward.7} parent=1 // pred_region
      %s148 = ssub.s32 256, 256
      %149 = vsyncadd [#allocation5], %s148
      %s150 = sshll.u32 [#allocation9], 4
      %s151 = int_to_ptr.vmem [resolvable:$true] %s150
      %156 = dma.vmem_to_hbm [thread:$0]  %s151, 256, %s3, [#allocation5], 128, 128, 8
    $region37: #{xeus_encoder_forward.7} parent=1 // pred_fallthru
      _
    // Predicated region
    $region38: #{xeus_encoder_forward.7} parent=1 // pred_check
      _
    $region39: #{xeus_encoder_forward.7} parent=1 // pred_check_branch
      %158 = sbr.rel (0) target = $region41
    $region40: #{xeus_encoder_forward.7} parent=1 // pred_region
      %159 = dma.done [#allocation5], 256
    $region41: #{xeus_encoder_forward.7} parent=1 // pred_fallthru
      _
    %160 = vsyncpa [#allocation4], 1
    %161 = vsyncpa [#allocation7], 1
    %162 = vsyncpa [#allocation5], 1

// kernel: xeus_encoder_forward.10
$region0: #{xeus_encoder_forward.10}
  #allocation0 [shape = 'u32[]', space=smem, size = 0x4, offset = 0x4, fixed_abs, tag = 'smem constant byte address 0x4 - core index']
  #allocation1 [shape = 'u32[144,128]{1,0:T(1,128)}', space=vmem, size = 0x12000, scoped, tag = 'internal scratch']
  %s0 = inlined_call_operand.hbm [shape: f32[16,32], index: 0, kind: input, shape index: {}]
  %s1 = inlined_call_operand.hbm [shape: f32[1,32], index: 1, kind: input, shape index: {}]
  %s2 = inlined_call_operand.hbm [shape: f32[1,32], index: 2, kind: input, shape index: {}]
  %s3 = inlined_call_operand.hbm [shape: bf16[32,64], index: 3, kind: input, shape index: {}]
  %s4 = inlined_call_operand.hbm [shape: f32[1,64], index: 4, kind: input, shape index: {}]
  %s5 = inlined_call_operand.hbm [shape: bf16[64,32], index: 5, kind: input, shape index: {}]
  %s6 = inlined_call_operand.hbm [shape: f32[1,32], index: 6, kind: input, shape index: {}]
  %s7 = inlined_call_operand.hbm [shape: f32[16,32], index: 7, kind: output, shape index: {}]
  %s8 = sld [smem:[#allocation0]]
  $region66: #{xeus_encoder_forward.10} parent=0
    _
  %s10 = ssub.s32 1, %s8
  %s11 = scalar_select 0, %s10, %s8
  $region1: #{xeus_encoder_forward.10} parent=0
    #allocation2 [shape = 'u8[8192]{0}', space=vmem, size = 0x2000, scoped, tag = 'input window, operand 0, single buffered']
    #allocation3 [shape = 's32[1]{0}', space=sflag, size = 0x4, scoped, tag = 'scoped memory for xeus_encoder_forward.10']
    #allocation4 [shape = 's32[1]{0}', space=sflag, size = 0x4, scoped, tag = 'scoped memory for xeus_encoder_forward.10']
    #allocation5 [shape = 'u8[512]{0}', space=vmem, size = 0x400, scoped, tag = 'input window, operand 1, single buffered']
    #allocation6 [shape = 's32[1]{0}', space=sflag, size = 0x4, scoped, tag = 'scoped memory for xeus_encoder_forward.10']
    #allocation7 [shape = 'u8[512]{0}', space=vmem, size = 0x400, scoped, tag = 'input window, operand 2, single buffered']
    #allocation8 [shape = 'u8[8192]{0}', space=vmem, size = 0x2000, scoped, tag = 'input window, operand 3, single buffered']
    #allocation9 [shape = 's32[1]{0}', space=sflag, size = 0x4, scoped, tag = 'scoped memory for xeus_encoder_forward.10']
    #allocation10 [shape = 'u8[512]{0}', space=vmem, size = 0x400, scoped, tag = 'input window, operand 4, single buffered']
    #allocation11 [shape = 'u8[16384]{0}', space=vmem, size = 0x4000, scoped, tag = 'input window, operand 5, single buffered']
    #allocation12 [shape = 's32[1]{0}', space=sflag, size = 0x4, scoped, tag = 'scoped memory for xeus_encoder_forward.10']
    #allocation13 [shape = 'u8[512]{0}', space=vmem, size = 0x400, scoped, tag = 'input window, operand 6, single buffered']
    #allocation14 [shape = 'u8[8192]{0}', space=vmem, size = 0x2000, scoped, tag = 'output window, operand 0, single buffered']
    %12 = vsyncpa [#allocation3], 0
    %13 = vsyncpa [#allocation6], 0
    %14 = vsyncpa [#allocation9], 0
    %15 = vsyncpa [#allocation12], 0
    %16 = vsyncpa [#allocation4], 0
    // Predicated region
    $region2: #{xeus_encoder_forward.10} parent=1 // pred_check
      _
    $region3: #{xeus_encoder_forward.10} parent=1 // pred_check_branch
      %18 = sbr.rel (0) target = $region5
    $region4: #{xeus_encoder_forward.10} parent=1 // pred_region
      %s20 = ssub.s32 256, 256
      %21 = vsyncadd [#allocation3], %s20
      %s22 = sshll.u32 [#allocation2], 4
      %s23 = int_to_ptr.vmem [resolvable:$true] %s22
      %28 = dma.hbm_to_vmem [thread:$0]  %s0, 256, %s23, [#allocation3], 128, 128, 8
    $region5: #{xeus_encoder_forward.10} parent=1 // pred_fallthru
      _
    // Predicated region
    $region6: #{xeus_encoder_forward.10} parent=1 // pred_check
      _
    $region7: #{xeus_encoder_forward.10} parent=1 // pred_check_branch
      %30 = sbr.rel (0) target = $region9
    $region8: #{xeus_encoder_forward.10} parent=1 // pred_region
      %s32 = ssub.s32 16, 16
      %33 = vsyncadd [#allocation6], %s32
      %s35 = sshll.u32 [#allocation5], 4
      %s36 = int_to_ptr.vmem [resolvable:$true] %s35
      %38 = dma.hbm_to_vmem [thread:$0]  %s1, 16, %s36, [#allocation6]
    $region9: #{xeus_encoder_forward.10} parent=1 // pred_fallthru
      _
    // Predicated region
    $region10: #{xeus_encoder_forward.10} parent=1 // pred_check
      _
    $region11: #{xeus_encoder_forward.10} parent=1 // pred_check_branch
      %40 = sbr.rel (0) target = $region13
    $region12: #{xeus_encoder_forward.10} parent=1 // pred_region
      %s42 = ssub.s32 16, 16
      %43 = vsyncadd [#allocation6], %s42
      %s45 = sshll.u32 [#allocation7], 4
      %s46 = int_to_ptr.vmem [resolvable:$true] %s45
      %48 = dma.hbm_to_vmem [thread:$0]  %s2, 16, %s46, [#allocation6]
    $region13: #{xeus_encoder_forward.10} parent=1 // pred_fallthru
      _
    // Predicated region
    $region14: #{xeus_encoder_forward.10} parent=1 // pred_check
      _
    $region15: #{xeus_encoder_forward.10} parent=1 // pred_check_branch
      %50 = sbr.rel (0) target = $region17
    $region16: #{xeus_encoder_forward.10} parent=1 // pred_region
      %s52 = ssub.s32 256, 256
      %53 = vsyncadd [#allocation9], %s52
      %s54 = sshll.u32 [#allocation8], 4
      %s55 = int_to_ptr.vmem [resolvable:$true] %s54
      %60 = dma.hbm_to_vmem [thread:$0]  %s3, 256, %s55, [#allocation9], 64, 64, 4
    $region17: #{xeus_encoder_forward.10} parent=1 // pred_fallthru
      _
    // Predicated region
    $region18: #{xeus_encoder_forward.10} parent=1 // pred_check
      _
    $region19: #{xeus_encoder_forward.10} parent=1 // pred_check_branch
      %62 = sbr.rel (0) target = $region21
    $region20: #{xeus_encoder_forward.10} parent=1 // pred_region
      %s64 = ssub.s32 16, 16
      %65 = vsyncadd [#allocation9], %s64
      %s67 = sshll.u32 [#allocation10], 4
      %s68 = int_to_ptr.vmem [resolvable:$true] %s67
      %70 = dma.hbm_to_vmem [thread:$0]  %s4, 16, %s68, [#allocation9]
    $region21: #{xeus_encoder_forward.10} parent=1 // pred_fallthru
      _
    // Predicated region
    $region22: #{xeus_encoder_forward.10} parent=1 // pred_check
      _
    $region23: #{xeus_encoder_forward.10} parent=1 // pred_check_branch
      %72 = sbr.rel (0) target = $region25
    $region24: #{xeus_encoder_forward.10} parent=1 // pred_region
      %s74 = ssub.s32 512, 512
      %75 = vsyncadd [#allocation12], %s74
      %s76 = sshll.u32 [#allocation11], 4
      %s77 = int_to_ptr.vmem [resolvable:$true] %s76
      %82 = dma.hbm_to_vmem [thread:$0]  %s5, 512, %s77, [#allocation12], 64, 64, 4
    $region25: #{xeus_encoder_forward.10} parent=1 // pred_fallthru
      _
    // Predicated region
    $region26: #{xeus_encoder_forward.10} parent=1 // pred_check
      _
    $region27: #{xeus_encoder_forward.10} parent=1 // pred_check_branch
      %84 = sbr.rel (0) target = $region29
    $region28: #{xeus_encoder_forward.10} parent=1 // pred_region
      %s86 = ssub.s32 16, 16
      %87 = vsyncadd [#allocation12], %s86
      %s89 = sshll.u32 [#allocation13], 4
      %s90 = int_to_ptr.vmem [resolvable:$true] %s89
      %92 = dma.hbm_to_vmem [thread:$0]  %s6, 16, %s90, [#allocation12]
    $region29: #{xeus_encoder_forward.10} parent=1 // pred_fallthru
      _
    // Predicated region
    $region30: #{xeus_encoder_forward.10} parent=1 // pred_check
      _
    $region31: #{xeus_encoder_forward.10} parent=1 // pred_check_branch
      %94 = sbr.rel (0) target = $region33
    $region32: #{xeus_encoder_forward.10} parent=1 // pred_region
      %95 = dma.done [#allocation3], 256
    $region33: #{xeus_encoder_forward.10} parent=1 // pred_fallthru
      _
    // Predicated region
    $region34: #{xeus_encoder_forward.10} parent=1 // pred_check
      _
    $region35: #{xeus_encoder_forward.10} parent=1 // pred_check_branch
      %97 = sbr.rel (0) target = $region37
    $region36: #{xeus_encoder_forward.10} parent=1 // pred_region
      %98 = dma.done [#allocation6], 16
    $region37: #{xeus_encoder_forward.10} parent=1 // pred_fallthru
      _
    // Predicated region
    $region38: #{xeus_encoder_forward.10} parent=1 // pred_check
      _
    $region39: #{xeus_encoder_forward.10} parent=1 // pred_check_branch
      %100 = sbr.rel (0) target = $region41
    $region40: #{xeus_encoder_forward.10} parent=1 // pred_region
      %101 = dma.done [#allocation6], 16
    $region41: #{xeus_encoder_forward.10} parent=1 // pred_fallthru
      _
    // Predicated region
    $region42: #{xeus_encoder_forward.10} parent=1 // pred_check
      _
    $region43: #{xeus_encoder_forward.10} parent=1 // pred_check_branch
      %103 = sbr.rel (0) target = $region45
    $region44: #{xeus_encoder_forward.10} parent=1 // pred_region
      %104 = dma.done [#allocation9], 256
    $region45: #{xeus_encoder_forward.10} parent=1 // pred_fallthru
      _
    // Predicated region
    $region46: #{xeus_encoder_forward.10} parent=1 // pred_check
      _
    $region47: #{xeus_encoder_forward.10} parent=1 // pred_check_branch
      %106 = sbr.rel (0) target = $region49
    $region48: #{xeus_encoder_forward.10} parent=1 // pred_region
      %107 = dma.done [#allocation9], 16
    $region49: #{xeus_encoder_forward.10} parent=1 // pred_fallthru
      _
    // Predicated region
    $region50: #{xeus_encoder_forward.10} parent=1 // pred_check
      _
    $region51: #{xeus_encoder_forward.10} parent=1 // pred_check_branch
      %109 = sbr.rel (0) target = $region53
    $region52: #{xeus_encoder_forward.10} parent=1 // pred_region
      %110 = dma.done [#allocation12], 512
    $region53: #{xeus_encoder_forward.10} parent=1 // pred_fallthru
      _
    // Predicated region
    $region54: #{xeus_encoder_forward.10} parent=1 // pred_check
      _
    $region55: #{xeus_encoder_forward.10} parent=1 // pred_check_branch
      %112 = sbr.rel (0) target = $region57
    $region56: #{xeus_encoder_forward.10} parent=1 // pred_region
      %113 = dma.done [#allocation12], 16
    $region57: #{xeus_encoder_forward.10} parent=1 // pred_fallthru
      _
    %v115 = vld [vmem:[#allocation2] sm:$0xff]
    %v116 = vld [vmem:[#allocation2 + $0x8] sm:$0xff]
    %vm117 = vcmask 261120
    %v118 = vsel %vm117, %v115, 0.0
    %119 = vadd.xlane.f32.xlu0 %v118
    %v120 = vpop.xlane.xlu0 %119
    %v121 = vsel %vm117, %v116, 0.0
    %122 = vadd.xlane.f32.xlu0 %v121
    %v123 = vpop.xlane.xlu0 %122
    %v124 = vrcp.pop 32.0
    %v125 = vmul.f32 %v120, %v124
    %v126 = vmul.f32 %v123, %v124
    %v127 = vsub.f32 %v115, %v125
    %v128 = vsub.f32 %v116, %v126
    %v129 = vmul.f32 %v127, %v127
    %v130 = vmul.f32 %v128, %v128
    %v131 = vsel %vm117, %v129, 0.0
    %132 = vadd.xlane.f32.xlu0 %v131
    %v133 = vpop.xlane.xlu0 %132
    %v134 = vsel %vm117, %v130, 0.0
    %135 = vadd.xlane.f32.xlu0 %v134
    %v136 = vpop.xlane.xlu0 %135
    %v137 = vmul.f32 %v133, %v124
    %v138 = vmul.f32 %v136, %v124
    %v139 = vadd.f32 %v137, 1e-05
    %v140 = vadd.f32 %v138, 1e-05
    %v141 = vrsqrt.pop %v139
    %v142 = vrsqrt.pop %v140
    %v143 = vmul.f32 %v127, %v141
    %v144 = vmul.f32 %v128, %v142
    %v145 = vld [vmem:[#allocation5] sm:$0x1]
    %v147 = vlaneseq
    %v148 = vshrl.u32 %v147, 7
    %v149 = vsub.s32 0, %v148
    %v150 = vrot.slane %v145, %v149
    %v152 = vmul.f32 %v143, %v150
    %v153 = vmul.f32 %v144, %v150
    %v154 = vld [vmem:[#allocation7] sm:$0x1]
    %v156 = vlaneseq
    %v157 = vshrl.u32 %v156, 7
    %v158 = vsub.s32 0, %v157
    %v159 = vrot.slane %v154, %v158
    %v161 = vadd.f32 %v152, %v159
    %v162 = vadd.f32 %v153, %v159
    %v163 = vpack.c.bf16 %v162, %v161
    %v164 = vld [vmem:[#allocation8] sm:$0xf]
    %v165 = vld [vmem:[#allocation8 + $0x4] sm:$0xf]
    %v166 = vld [vmem:[#allocation8 + $0x8] sm:$0xf]
    %v167 = vld [vmem:[#allocation8 + $0xc] sm:$0xf]
    %v168 = vld [vmem:[#allocation10] sm:$0x1]
    %v170 = vlaneseq
    %v171 = vshrl.u32 %v170, 7
    %v172 = vsub.s32 0, %v171
    %v173 = vrot.slane %v168, %v172
    %v179 = vunpack.c.l.b16 %v164
    %v180 = vunpack.c.l.b16 %v165
    %v181 = vunpack.c.l.b16 %v166
    %v182 = vunpack.c.l.b16 %v167
    %v183 = vpack.c.b16 %v180, %v179
    %v184 = vpack.c.b16 %v182, %v181
    %v188 = vsel %vm117, %v163, 0
    %190 = vmatprep.subr.bf16.mxu0 0
    %191 = vmatpush1.bf16.msra.mxu0 %v183
    %192 = vmatprep.subr.bf16.mxu0 0
    %193 = vmatpush1.bf16.msra.mxu0 %v184
    %194 = vmatprep.subr.bf16.mxu0 0
    %195 = vmatpush1.bf16.msra.mxu0 0
    %196 = vmatprep.subr.bf16.mxu0 0
    %197 = vmatpush1.bf16.msra.mxu0 0
    %198 = vmatprep.subr.bf16.mxu0 0
    %199 = vmatpush1.bf16.msra.mxu0 0
    %200 = vmatprep.subr.bf16.mxu0 0
    %201 = vmatpush1.bf16.msra.mxu0 0
    %202 = vmatprep.subr.bf16.mxu0 0
    %203 = vmatpush1.bf16.msra.mxu0 0
    %204 = vmatprep.subr.bf16.mxu0 0
    %205 = vmatpush1.bf16.msra.mxu0 0
    %206 = vmatprep.subr.bf16.mxu0 0
    %207 = vmatpush1.bf16.msra.mxu0 0
    %208 = vmatprep.subr.bf16.mxu0 0
    %209 = vmatpush1.bf16.msra.mxu0 0
    %210 = vmatprep.subr.bf16.mxu0 0
    %211 = vmatpush1.bf16.msra.mxu0 0
    %212 = vmatprep.subr.bf16.mxu0 0
    %213 = vmatpush1.bf16.msra.mxu0 0
    %214 = vmatprep.subr.bf16.mxu0 0
    %215 = vmatpush1.bf16.msra.mxu0 0
    %216 = vmatprep.subr.bf16.mxu0 0
    %217 = vmatpush1.bf16.msra.mxu0 0
    %218 = vmatprep.subr.bf16.mxu0 0
    %219 = vmatpush1.bf16.msra.mxu0 0
    %220 = vmatprep.subr.bf16.mxu0 0
    %221 = vmatpush1.bf16.msra.mxu0 0
    %222 = vmatprep.mubr.bf16.mxu0 0
    %223 = vmatmul.mubr.bf16.gmra.mrb[0].mxu0 %v188
    %v224 = vpop.f32.mrb[0].mxu0
    %v225 = vadd.f32 %v173, %v224
    %v226 = vpop.f32.mrb[0].mxu0
    %v227 = vpop.f32.mrb[0].mxu0
    %v228 = vadd.f32 %v173, %v227
    %v229 = vpop.f32.mrb[0].mxu0
    %230 = vdwg.mxu0
    %v231 = vmul.f32 %v225, %v225
    %v232 = vmul.f32 %v228, %v228
    %v233 = vmul.f32 %v225, %v231
    %v234 = vmul.f32 %v228, %v232
    %v235 = vmul.f32 %v233, 0.044715
    %v236 = vmul.f32 %v234, 0.044715
    %v237 = vadd.f32 %v225, %v235
    %v238 = vadd.f32 %v228, %v236
    %v239 = vmul.f32 %v237, 0.7978846
    %v240 = vmul.f32 %v238, 0.7978846
    %v241 = vtanh.pop %v239
    %v242 = vtanh.pop %v240
    %v243 = vadd.f32 %v241, 1.0
    %v244 = vadd.f32 %v242, 1.0
    %v245 = vmul.f32 %v243, 0.5
    %v246 = vmul.f32 %v244, 0.5
    %v247 = vmul.f32 %v225, %v245
    %v248 = vmul.f32 %v228, %v246
    %v249 = vpack.c.bf16 %v248, %v247
    %v250 = vld [vmem:[#allocation11] sm:$0xf]
    %v251 = vld [vmem:[#allocation11 + $0x4] sm:$0xf]
    %v252 = vld [vmem:[#allocation11 + $0x8] sm:$0xf]
    %v253 = vld [vmem:[#allocation11 + $0xc] sm:$0xf]
    %v254 = vld [vmem:[#allocation11 + $0x10] sm:$0xf]
    %v255 = vld [vmem:[#allocation11 + $0x14] sm:$0xf]
    %v256 = vld [vmem:[#allocation11 + $0x18] sm:$0xf]
    %v257 = vld [vmem:[#allocation11 + $0x1c] sm:$0xf]
    %v258 = vld [vmem:[#allocation13] sm:$0x1]
    %v260 = vlaneseq
    %v261 = vshrl.u32 %v260, 7
    %v262 = vsub.s32 0, %v261
    %v263 = vrot.slane %v258, %v262
    %v273 = vunpack.c.l.b16 %v250
    %v274 = vunpack.c.l.b16 %v251
    %v275 = vunpack.c.l.b16 %v252
    %v276 = vunpack.c.l.b16 %v253
    %v277 = vunpack.c.l.b16 %v254
    %v278 = vunpack.c.l.b16 %v255
    %v279 = vunpack.c.l.b16 %v256
    %v280 = vunpack.c.l.b16 %v257
    %v281 = vpack.c.b16 %v274, %v273
    %v282 = vpack.c.b16 %v276, %v275
    %v283 = vpack.c.b16 %v278, %v277
    %v284 = vpack.c.b16 %v280, %v279
    %vm289 = vcmask 523264
    %v291 = vsel %vm289, %v249, 0
    %293 = vmatprep.subr.bf16.mxu0 0
    %294 = vmatpush1.bf16.msra.mxu0 %v281
    %295 = vmatprep.subr.bf16.mxu0 0
    %296 = vmatpush1.bf16.msra.mxu0 %v282
    %297 = vmatprep.subr.bf16.mxu0 0
    %298 = vmatpush1.bf16.msra.mxu0 %v283
    %299 = vmatprep.subr.bf16.mxu0 0
    %300 = vmatpush1.bf16.msra.mxu0 %v284
    %301 = vmatprep.subr.bf16.mxu0 0
    %302 = vmatpush1.bf16.msra.mxu0 0
    %303 = vmatprep.subr.bf16.mxu0 0
    %304 = vmatpush1.bf16.msra.mxu0 0
    %305 = vmatprep.subr.bf16.mxu0 0
    %306 = vmatpush1.bf16.msra.mxu0 0
    %307 = vmatprep.subr.bf16.mxu0 0
    %308 = vmatpush1.bf16.msra.mxu0 0
    %309 = vmatprep.subr.bf16.mxu0 0
    %310 = vmatpush1.bf16.msra.mxu0 0
    %311 = vmatprep.subr.bf16.mxu0 0
    %312 = vmatpush1.bf16.msra.mxu0 0
    %313 = vmatprep.subr.bf16.mxu0 0
    %314 = vmatpush1.bf16.msra.mxu0 0
    %315 = vmatprep.subr.bf16.mxu0 0
    %316 = vmatpush1.bf16.msra.mxu0 0
    %317 = vmatprep.subr.bf16.mxu0 0
    %318 = vmatpush1.bf16.msra.mxu0 0
    %319 = vmatprep.subr.bf16.mxu0 0
    %320 = vmatpush1.bf16.msra.mxu0 0
    %321 = vmatprep.subr.bf16.mxu0 0
    %322 = vmatpush1.bf16.msra.mxu0 0
    %323 = vmatprep.subr.bf16.mxu0 0
    %324 = vmatpush1.bf16.msra.mxu0 0
    %325 = vmatprep.mubr.bf16.mxu0 0
    %326 = vmatmul.mubr.bf16.gmra.mrb[0].mxu0 %v291
    %v327 = vpop.f32.mrb[0].mxu0
    %v328 = vadd.f32 %v263, %v327
    %v329 = vpop.f32.mrb[0].mxu0
    %v330 = vpop.f32.mrb[0].mxu0
    %v331 = vadd.f32 %v263, %v330
    %v332 = vpop.f32.mrb[0].mxu0
    %333 = vdwg.mxu0
    %v334 = vadd.f32 %v115, %v328
    %v335 = vadd.f32 %v116, %v331
    %336 = vst.msk [vmem:[#allocation14] sm:$0xff] %vm117, %v334
    %337 = vst.msk [vmem:[#allocation14 + $0x8] sm:$0xff] %vm117, %v335
    // Predicated region
    $region58: #{xeus_encoder_forward.10} parent=1 // pred_check
      _
    $region59: #{xeus_encoder_forward.10} parent=1 // pred_check_branch
      %339 = sbr.rel (0) target = $region61
    $region60: #{xeus_encoder_forward.10} parent=1 // pred_region
      %s341 = ssub.s32 256, 256
      %342 = vsyncadd [#allocation4], %s341
      %s343 = sshll.u32 [#allocation14], 4
      %s344 = int_to_ptr.vmem [resolvable:$true] %s343
      %349 = dma.vmem_to_hbm [thread:$0]  %s344, 256, %s7, [#allocation4], 128, 128, 8
    $region61: #{xeus_encoder_forward.10} parent=1 // pred_fallthru
      _
    // Predicated region
    $region62: #{xeus_encoder_forward.10} parent=1 // pred_check
      _
    $region63: #{xeus_encoder_forward.10} parent=1 // pred_check_branch
      %351 = sbr.rel (0) target = $region65
    $region64: #{xeus_encoder_forward.10} parent=1 // pred_region
      %352 = dma.done [#allocation4], 256
    $region65: #{xeus_encoder_forward.10} parent=1 // pred_fallthru
      _
    %353 = vsyncpa [#allocation3], 1
    %354 = vsyncpa [#allocation6], 1
    %355 = vsyncpa [#allocation9], 1
    %356 = vsyncpa [#allocation12], 1
    %357 = vsyncpa [#allocation4], 1

// kernel: xeus_encoder_forward.9
$region0: #{xeus_encoder_forward.9}
  #allocation0 [shape = 'u32[]', space=smem, size = 0x4, offset = 0x4, fixed_abs, tag = 'smem constant byte address 0x4 - core index']
  #allocation1 [shape = 'u32[144,128]{1,0:T(1,128)}', space=vmem, size = 0x12000, scoped, tag = 'internal scratch']
  #allocation2 [shape = 's32[1]{0}', space=sflag, size = 0x4, scoped, tag = 'scoped memory for xeus_encoder_forward.9']
  #allocation3 [shape = 'u8[512]{0}', space=smem, size = 0x200, scoped, tag = 'prefetched SMEM operand 0']
  %s0 = inlined_call_operand.hbm [shape: s32[2], index: 0, kind: input, shape index: {}]
  %s1 = inlined_call_operand.hbm [shape: f32[2,8,32], index: 1, kind: input, shape index: {}]
  %s2 = inlined_call_operand.hbm [shape: bf16[2,4,8,8], index: 2, kind: input, shape index: {}]
  %s3 = inlined_call_operand.hbm [shape: bf16[2,4,8,8], index: 3, kind: input, shape index: {}]
  %s4 = inlined_call_operand.hbm [shape: bf16[2,4,8,8], index: 4, kind: input, shape index: {}]
  %s5 = inlined_call_operand.hbm [shape: bf16[4,8,32], index: 5, kind: input, shape index: {}]
  %s6 = inlined_call_operand.hbm [shape: f32[1,32], index: 6, kind: input, shape index: {}]
  %s7 = inlined_call_operand.hbm [shape: f32[2,8,32], index: 7, kind: output, shape index: {}]
  %s8 = sld [smem:[#allocation0]]
  $region85: #{xeus_encoder_forward.9} parent=0
    _
  %s10 = ssub.s32 1, %s8
  %s11 = scalar_select 0, %s10, %s8
  %13 = dma.hbm_to_smem %s0, 16, [#allocation3], [#allocation2]
  %14 = dma.done [#allocation2], 16
  %15 = sfence
  $region1: #{xeus_encoder_forward.9} parent=0
    #allocation4 [shape = 'u8[8192]{0}', space=vmem, size = 0x2000, scoped, tag = 'input window, operand 1']
    #allocation5 [shape = 's32[2]{0}', space=sflag, size = 0x8, scoped, tag = 'scoped memory for xeus_encoder_forward.9']
    #allocation6 [shape = 's32[2]{0}', space=sflag, size = 0x8, scoped, tag = 'scoped memory for xeus_encoder_forward.9']
    #allocation7 [shape = 'u8[4096]{0}', space=vmem, size = 0x1000, scoped, tag = 'input window, operand 2']
    #allocation8 [shape = 's32[2]{0}', space=sflag, size = 0x8, scoped, tag = 'scoped memory for xeus_encoder_forward.9']
    #allocation9 [shape = 'u8[4096]{0}', space=vmem, size = 0x1000, scoped, tag = 'input window, operand 3']
    #allocation10 [shape = 'u8[4096]{0}', space=vmem, size = 0x1000, scoped, tag = 'input window, operand 4']
    #allocation11 [shape = 's32[2]{0}', space=sflag, size = 0x8, scoped, tag = 'scoped memory for xeus_encoder_forward.9']
    #allocation12 [shape = 'u8[4096]{0}', space=vmem, size = 0x1000, scoped, tag = 'input window, operand 5']
    #allocation13 [shape = 'u8[512]{0}', space=vmem, size = 0x400, scoped, tag = 'input window, operand 6, single buffered']
    #allocation14 [shape = 's32[1]{0}', space=sflag, size = 0x4, scoped, tag = 'scoped memory for xeus_encoder_forward.9']
    #allocation15 [shape = 'u8[8192]{0}', space=vmem, size = 0x2000, scoped, tag = 'output window, operand 0']
    %16 = vsyncpa [#allocation5], 0
    %s17 = scalar_lea.sflag [#allocation5], 1
    %18 = vsyncpa %s17, 0
    %19 = vsyncpa [#allocation8], 0
    %s20 = scalar_lea.sflag [#allocation8], 1
    %21 = vsyncpa %s20, 0
    %22 = vsyncpa [#allocation11], 0
    %s23 = scalar_lea.sflag [#allocation11], 1
    %24 = vsyncpa %s23, 0
    %25 = vsyncpa [#allocation14], 0
    %26 = vsyncpa [#allocation6], 0
    %s27 = scalar_lea.sflag [#allocation6], 1
    %28 = vsyncpa %s27, 0
    loop: start=0, step=1, limit=10
    $region2: #{xeus_encoder_forward.9} parent=1 // loop_pre_header
      _
    $region3: #{xeus_encoder_forward.9} parent=1 // loop_header
      %s30 = sphi 0, %s34
      %p31 = scmp.ge.s32.totalorder %s30, 10
      %s37 = sphi 0, %s49
      %s38 = sphi 0, %s45
      %s39 = sphi 0, %s37
      %s40 = sphi 0, %s38
      %s41 = sphi 0, %s39
      %s42 = sphi 0, %s40
      %s52 = sphi 0, %s54
      %s55 = sphi 0, %s52
      %s56 = sphi 0, %s55
      %s72 = sphi 0, %s56
      %s80 = sphi 0, %s82
      %s83 = sphi 0, %s80
      %s84 = sphi 0, %s83
      %s100 = sphi 0, %s84
      %s108 = sphi 0, %s110
      %s111 = sphi 0, %s108
      %s112 = sphi 0, %s111
      %s128 = sphi 0, %s112
      %s136 = sphi 0, %s138
      %s139 = sphi 0, %s136
      %s140 = sphi 0, %s139
      %s156 = sphi 0, %s140
      %s162 = sphi 0, %s164
      %s165 = sphi 0, %s162
      %s166 = sphi 0, %s165
      %s182 = sphi 0, %s166
      %s186 = sphi 0, %s186
      %s188 = sphi 0, %s186
      %s189 = sphi 0, %s188
      %s203 = sphi 0, %s189
      %s209 = sphi 0, %s211
      %s212 = sphi 0, %s209
      %s213 = sphi 0, %s212
      %s229 = sphi 0, %s213
    $region4: #{xeus_encoder_forward.9} parent=1 // loop_header_branch
      %33 = sbr.rel (%p31) target = $region8
    $region5: #{xeus_encoder_forward.9} parent=1 // loop_body
      %s35 = ssub.s32 %s30, 1
      %s36 = ssub.s32 %s30, 2
      %s43 = sadd.s32 1, %s38
      %p44 = scmp.ge.s32.totalorder %s43, 4
      %s45 = scalar_select %p44, 0, %s43
      %s46 = sadd.s32 1, %s37
      %s47 = scalar_select %p44, %s46, %s37
      %p48 = scmp.ge.s32.totalorder %s47, 2
      %s49 = scalar_select %p48, 0, %s47
      %s50 = ssub.s32 %s37, %s49
      %p51 = scmp.eq.s32.totalorder %s50, 0
      %s53 = sadd.s32 %s52, 1
      %s54 = scalar_select %p51, %s52, %s53
      %p57 = pneg %p51
      %p58 = scmp.eq.s32.totalorder %s30, 7
      %p59 = por %p57, %p58
      %p60 = scmp.ne.s32.totalorder %s52, %s55
      %p61 = scmp.eq.s32.totalorder %s30, 0
      %p62 = por %p60, %p61
      %p63 = scmp.ne.s32.totalorder %s52, %s55
      %p64 = scmp.eq.s32.totalorder %s35, 7
      %p65 = por %p63, %p64
      %p66 = scmp.ne.s32.totalorder %s55, %s56
      %p67 = scmp.eq.s32.totalorder %s35, 0
      %p68 = por %p66, %p67
      %p69 = scmp.ne.s32.totalorder %s55, %s56
      %p70 = scmp.eq.s32.totalorder %s36, 7
      %p71 = por %p69, %p70
      %p73 = scmp.ne.s32.totalorder %s56, %s72
      %p74 = scmp.eq.s32.totalorder %s36, 0
      %p75 = por %p73, %p74
      %s76 = ssub.s32 %s37, %s49
      %s77 = ssub.s32 %s38, %s45
      %s78 = sor.u32 %s76, %s77
      %p79 = scmp.eq.s32.totalorder %s78, 0
      %s81 = sadd.s32 %s80, 1
      %s82 = scalar_select %p79, %s80, %s81
      %p85 = pneg %p79
      %p86 = scmp.eq.s32.totalorder %s30, 7
      %p87 = por %p85, %p86
      %p88 = scmp.ne.s32.totalorder %s80, %s83
      %p89 = scmp.eq.s32.totalorder %s30, 0
      %p90 = por %p88, %p89
      %p91 = scmp.ne.s32.totalorder %s80, %s83
      %p92 = scmp.eq.s32.totalorder %s35, 7
      %p93 = por %p91, %p92
      %p94 = scmp.ne.s32.totalorder %s83, %s84
      %p95 = scmp.eq.s32.totalorder %s35, 0
      %p96 = por %p94, %p95
      %p97 = scmp.ne.s32.totalorder %s83, %s84
      %p98 = scmp.eq.s32.totalorder %s36, 7
      %p99 = por %p97, %p98
      %p101 = scmp.ne.s32.totalorder %s84, %s100
      %p102 = scmp.eq.s32.totalorder %s36, 0
      %p103 = por %p101, %p102
      %s104 = ssub.s32 %s37, %s49
      %s105 = ssub.s32 %s38, %s45
      %s106 = sor.u32 %s104, %s105
      %p107 = scmp.eq.s32.totalorder %s106, 0
      %s109 = sadd.s32 %s108, 1
      %s110 = scalar_select %p107, %s108, %s109
      %p113 = pneg %p107
      %p114 = scmp.eq.s32.totalorder %s30, 7
      %p115 = por %p113, %p114
      %p116 = scmp.ne.s32.totalorder %s108, %s111
      %p117 = scmp.eq.s32.totalorder %s30, 0
      %p118 = por %p116, %p117
      %p119 = scmp.ne.s32.totalorder %s108, %s111
      %p120 = scmp.eq.s32.totalorder %s35, 7
      %p121 = por %p119, %p120
      %p122 = scmp.ne.s32.totalorder %s111, %s112
      %p123 = scmp.eq.s32.totalorder %s35, 0
      %p124 = por %p122, %p123
      %p125 = scmp.ne.s32.totalorder %s111, %s112
      %p126 = scmp.eq.s32.totalorder %s36, 7
      %p127 = por %p125, %p126
      %p129 = scmp.ne.s32.totalorder %s112, %s128
      %p130 = scmp.eq.s32.totalorder %s36, 0
      %p131 = por %p129, %p130
      %s132 = ssub.s32 %s37, %s49
      %s133 = ssub.s32 %s38, %s45
      %s134 = sor.u32 %s132, %s133
      %p135 = scmp.eq.s32.totalorder %s134, 0
      %s137 = sadd.s32 %s136, 1
      %s138 = scalar_select %p135, %s136, %s137
      %p141 = pneg %p135
      %p142 = scmp.eq.s32.totalorder %s30, 7
      %p143 = por %p141, %p142
      %p144 = scmp.ne.s32.totalorder %s136, %s139
      %p145 = scmp.eq.s32.totalorder %s30, 0
      %p146 = por %p144, %p145
      %p147 = scmp.ne.s32.totalorder %s136, %s139
      %p148 = scmp.eq.s32.totalorder %s35, 7
      %p149 = por %p147, %p148
      %p150 = scmp.ne.s32.totalorder %s139, %s140
      %p151 = scmp.eq.s32.totalorder %s35, 0
      %p152 = por %p150, %p151
      %p153 = scmp.ne.s32.totalorder %s139, %s140
      %p154 = scmp.eq.s32.totalorder %s36, 7
      %p155 = por %p153, %p154
      %p157 = scmp.ne.s32.totalorder %s140, %s156
      %p158 = scmp.eq.s32.totalorder %s36, 0
      %p159 = por %p157, %p158
      %s160 = ssub.s32 %s38, %s45
      %p161 = scmp.eq.s32.totalorder %s160, 0
      %s163 = sadd.s32 %s162, 1
      %s164 = scalar_select %p161, %s162, %s163
      %p167 = pneg %p161
      %p168 = scmp.eq.s32.totalorder %s30, 7
      %p169 = por %p167, %p168
      %p170 = scmp.ne.s32.totalorder %s162, %s165
      %p171 = scmp.eq.s32.totalorder %s30, 0
      %p172 = por %p170, %p171
      %p173 = scmp.ne.s32.totalorder %s162, %s165
      %p174 = scmp.eq.s32.totalorder %s35, 7
      %p175 = por %p173, %p174
      %p176 = scmp.ne.s32.totalorder %s165, %s166
      %p177 = scmp.eq.s32.totalorder %s35, 0
      %p178 = por %p176, %p177
      %p179 = scmp.ne.s32.totalorder %s165, %s166
      %p180 = scmp.eq.s32.totalorder %s36, 7
      %p181 = por %p179, %p180
      %p183 = scmp.ne.s32.totalorder %s166, %s182
      %p184 = scmp.eq.s32.totalorder %s36, 0
      %p185 = por %p183, %p184
      %s187 = sadd.s32 %s186, 1
      %p190 = scmp.eq.s32.totalorder %s30, 7
      %p191 = scmp.ne.s32.totalorder %s186, %s188
      %p192 = scmp.eq.s32.totalorder %s30, 0
      %p193 = por %p191, %p192
      %p194 = scmp.ne.s32.totalorder %s186, %s188
      %p195 = scmp.eq.s32.totalorder %s35, 7
      %p196 = por %p194, %p195
      %p197 = scmp.ne.s32.totalorder %s188, %s189
      %p198 = scmp.eq.s32.totalorder %s35, 0
      %p199 = por %p197, %p198
      %p200 = scmp.ne.s32.totalorder %s188, %s189
      %p201 = scmp.eq.s32.totalorder %s36, 7
      %p202 = por %p200, %p201
      %p204 = scmp.ne.s32.totalorder %s189, %s203
      %p205 = scmp.eq.s32.totalorder %s36, 0
      %p206 = por %p204, %p205
      %s207 = ssub.s32 %s37, %s49
      %p208 = scmp.eq.s32.totalorder %s207, 0
      %s210 = sadd.s32 %s209, 1
      %s211 = scalar_select %p208, %s209, %s210
      %p214 = pneg %p208
      %p215 = scmp.eq.s32.totalorder %s30, 7
      %p216 = por %p214, %p215
      %p217 = scmp.ne.s32.totalorder %s209, %s212
      %p218 = scmp.eq.s32.totalorder %s30, 0
      %p219 = por %p217, %p218
      %p220 = scmp.ne.s32.totalorder %s209, %s212
      %p221 = scmp.eq.s32.totalorder %s35, 7
      %p222 = por %p220, %p221
      %p223 = scmp.ne.s32.totalorder %s212, %s213
      %p224 = scmp.eq.s32.totalorder %s35, 0
      %p225 = por %p223, %p224
      %p226 = scmp.ne.s32.totalorder %s212, %s213
      %p227 = scmp.eq.s32.totalorder %s36, 7
      %p228 = por %p226, %p227
      %p230 = scmp.ne.s32.totalorder %s213, %s229
      %p231 = scmp.eq.s32.totalorder %s36, 0
      %p232 = por %p230, %p231
      %p233 = scmp.le.s32.totalorder 1, %s30
      %p234 = scmp.lt.s32.totalorder %s30, 9
      %p235 = pnand %p233, %p234
      %p236 = pneg %p235
      // Predicated region
      $region9: #{xeus_encoder_forward.9} parent=5 // pred_check
        _
      $region10: #{xeus_encoder_forward.9} parent=5 // pred_check_branch
        %238 = sbr.rel (%p235) target = $region12
      $region11: #{xeus_encoder_forward.9} parent=5 // pred_region
        %s239 = ssub.s32 %s30, 1
        // Predicated region
        $region13: #{xeus_encoder_forward.9} parent=11 // pred_check
          %p240 = pneg %p199
        $region14: #{xeus_encoder_forward.9} parent=11 // pred_check_branch
          %242 = sbr.rel (%p240) target = $region16
        $region15: #{xeus_encoder_forward.9} parent=11 // pred_region
          %s244 = ssub.s32 16, 16
          %245 = vsyncadd [#allocation14], %s244
          %s247 = sshll.u32 [#allocation13], 4
          %s248 = int_to_ptr.vmem [resolvable:$true] %s247
          %250 = dma.hbm_to_vmem [thread:$0]  %s6, 16, %s248, [#allocation14]
        $region16: #{xeus_encoder_forward.9} parent=11 // pred_fallthru
          _
      $region12: #{xeus_encoder_forward.9} parent=5 // pred_fallthru
        _
      %p251 = scmp.lt.s32.totalorder %s30, 8
      // Predicated region
      $region17: #{xeus_encoder_forward.9} parent=5 // pred_check
        %p252 = pneg %p251
      $region18: #{xeus_encoder_forward.9} parent=5 // pred_check_branch
        %254 = sbr.rel (%p252) target = $region20
      $region19: #{xeus_encoder_forward.9} parent=5 // pred_region
        // Predicated region
        $region21: #{xeus_encoder_forward.9} parent=19 // pred_check
          %p255 = pneg %p62
        $region22: #{xeus_encoder_forward.9} parent=19 // pred_check_branch
          %257 = sbr.rel (%p255) target = $region24
        $region23: #{xeus_encoder_forward.9} parent=19 // pred_region
          %s258 = sand.u32 %s52, 1
          %s259 = scalar_lea.sflag [#allocation5], %s258
          %s260 = sand.u32 %s52, 1
          %s261 = smul.addr %s260, 8
          %s262 = scalar_lea.vmem [#allocation4], %s261
          %s264 = ssub.s32 128, 128
          %265 = vsyncadd %s259, %s264
          %s266 = smul.addr %s37, 128
          %s267 = scalar_lea.hbm %s1, %s266
          %s269 = sshll.u32 %s262, 4
          %s270 = int_to_ptr.vmem [resolvable:$true] %s269
          %272 = dma.hbm_to_vmem [thread:$0]  %s267, 128, %s270, %s259
        $region24: #{xeus_encoder_forward.9} parent=19 // pred_fallthru
          _
        // Predicated region
        $region25: #{xeus_encoder_forward.9} parent=19 // pred_check
          %p273 = pneg %p90
        $region26: #{xeus_encoder_forward.9} parent=19 // pred_check_branch
          %275 = sbr.rel (%p273) target = $region28
        $region27: #{xeus_encoder_forward.9} parent=19 // pred_region
          %s276 = sand.u32 %s30, 1
          %s277 = scalar_lea.sflag [#allocation8], %s276
          %s278 = sand.u32 %s80, 1
          %s279 = smul.addr %s278, 4
          %s280 = scalar_lea.vmem [#allocation7], %s279
          %s282 = ssub.s32 64, 64
          %283 = vsyncadd %s277, %s282
          %s284 = smul.addr %s37, 4
          %s285 = sadd.s32 %s38, %s284
          %s286 = smul.addr %s285, 64
          %s287 = scalar_lea.hbm %s2, %s286
          %s289 = sshll.u32 %s280, 4
          %s290 = int_to_ptr.vmem [resolvable:$true] %s289
          %292 = dma.hbm_to_vmem [thread:$0]  %s287, 64, %s290, %s277
        $region28: #{xeus_encoder_forward.9} parent=19 // pred_fallthru
          _
        // Predicated region
        $region29: #{xeus_encoder_forward.9} parent=19 // pred_check
          %p293 = pneg %p118
        $region30: #{xeus_encoder_forward.9} parent=19 // pred_check_branch
          %295 = sbr.rel (%p293) target = $region32
        $region31: #{xeus_encoder_forward.9} parent=19 // pred_region
          %s296 = sand.u32 %s30, 1
          %s297 = scalar_lea.sflag [#allocation8], %s296
          %s298 = sand.u32 %s108, 1
          %s299 = smul.addr %s298, 4
          %s300 = scalar_lea.vmem [#allocation9], %s299
          %s302 = ssub.s32 64, 64
          %303 = vsyncadd %s297, %s302
          %s304 = smul.addr %s37, 4
          %s305 = sadd.s32 %s38, %s304
          %s306 = smul.addr %s305, 64
          %s307 = scalar_lea.hbm %s3, %s306
          %s309 = sshll.u32 %s300, 4
          %s310 = int_to_ptr.vmem [resolvable:$true] %s309
          %312 = dma.hbm_to_vmem [thread:$0]  %s307, 64, %s310, %s297
        $region32: #{xeus_encoder_forward.9} parent=19 // pred_fallthru
          _
        // Predicated region
        $region33: #{xeus_encoder_forward.9} parent=19 // pred_check
          %p313 = pneg %p146
        $region34: #{xeus_encoder_forward.9} parent=19 // pred_check_branch
          %315 = sbr.rel (%p313) target = $region36
        $region35: #{xeus_encoder_forward.9} parent=19 // pred_region
          %s316 = sand.u32 %s30, 1
          %s317 = scalar_lea.sflag [#allocation11], %s316
          %s318 = sand.u32 %s136, 1
          %s319 = smul.addr %s318, 4
          %s320 = scalar_lea.vmem [#allocation10], %s319
          %s322 = ssub.s32 64, 64
          %323 = vsyncadd %s317, %s322
          %s324 = smul.addr %s37, 4
          %s325 = sadd.s32 %s38, %s324
          %s326 = smul.addr %s325, 64
          %s327 = scalar_lea.hbm %s4, %s326
          %s329 = sshll.u32 %s320, 4
          %s330 = int_to_ptr.vmem [resolvable:$true] %s329
          %332 = dma.hbm_to_vmem [thread:$0]  %s327, 64, %s330, %s317
        $region36: #{xeus_encoder_forward.9} parent=19 // pred_fallthru
          _
        // Predicated region
        $region37: #{xeus_encoder_forward.9} parent=19 // pred_check
          %p333 = pneg %p172
        $region38: #{xeus_encoder_forward.9} parent=19 // pred_check_branch
          %335 = sbr.rel (%p333) target = $region40
        $region39: #{xeus_encoder_forward.9} parent=19 // pred_region
          %s336 = sand.u32 %s30, 1
          %s337 = scalar_lea.sflag [#allocation11], %s336
          %s338 = sand.u32 %s162, 1
          %s339 = smul.addr %s338, 4
          %s340 = scalar_lea.vmem [#allocation12], %s339
          %s342 = ssub.s32 64, 64
          %343 = vsyncadd %s337, %s342
          %s344 = smul.addr %s38, 64
          %s345 = scalar_lea.hbm %s5, %s344
          %s347 = sshll.u32 %s340, 4
          %s348 = int_to_ptr.vmem [resolvable:$true] %s347
          %350 = dma.hbm_to_vmem [thread:$0]  %s345, 64, %s348, %s337
        $region40: #{xeus_encoder_forward.9} parent=19 // pred_fallthru
          _
      $region20: #{xeus_encoder_forward.9} parent=5 // pred_fallthru
        _
      %p351 = scmp.le.s32.totalorder 1, %s30
      %p352 = scmp.lt.s32.totalorder %s30, 9
      %p353 = pnand %p351, %p352
      %p354 = pneg %p353
      // Predicated region
      $region41: #{xeus_encoder_forward.9} parent=5 // pred_check
        _
      $region42: #{xeus_encoder_forward.9} parent=5 // pred_check_branch
        %356 = sbr.rel (%p353) target = $region44
      $region43: #{xeus_encoder_forward.9} parent=5 // pred_region
        %s357 = ssub.s32 %s30, 1
        %s358 = sand.u32 %s55, 1
        %s359 = scalar_lea.sflag [#allocation5], %s358
        %s360 = sand.u32 %s55, 1
        %s361 = smul.addr %s360, 8
        %s362 = scalar_lea.vmem [#allocation4], %s361
        // Predicated region
        $region45: #{xeus_encoder_forward.9} parent=43 // pred_check
          %p363 = pneg %p68
        $region46: #{xeus_encoder_forward.9} parent=43 // pred_check_branch
          %365 = sbr.rel (%p363) target = $region48
        $region47: #{xeus_encoder_forward.9} parent=43 // pred_region
          %366 = dma.done %s359, 128
        $region48: #{xeus_encoder_forward.9} parent=43 // pred_fallthru
          _
        %s367 = sand.u32 %s35, 1
        %s368 = scalar_lea.sflag [#allocation8], %s367
        %s369 = sand.u32 %s83, 1
        %s370 = smul.addr %s369, 4
        %s371 = scalar_lea.vmem [#allocation7], %s370
        // Predicated region
        $region49: #{xeus_encoder_forward.9} parent=43 // pred_check
          %p372 = pneg %p96
        $region50: #{xeus_encoder_forward.9} parent=43 // pred_check_branch
          %374 = sbr.rel (%p372) target = $region52
        $region51: #{xeus_encoder_forward.9} parent=43 // pred_region
          %375 = dma.done %s368, 64
        $region52: #{xeus_encoder_forward.9} parent=43 // pred_fallthru
          _
        %s376 = sand.u32 %s35, 1
        %s377 = scalar_lea.sflag [#allocation8], %s376
        %s378 = sand.u32 %s111, 1
        %s379 = smul.addr %s378, 4
        %s380 = scalar_lea.vmem [#allocation9], %s379
        // Predicated region
        $region53: #{xeus_encoder_forward.9} parent=43 // pred_check
          %p381 = pneg %p124
        $region54: #{xeus_encoder_forward.9} parent=43 // pred_check_branch
          %383 = sbr.rel (%p381) target = $region56
        $region55: #{xeus_encoder_forward.9} parent=43 // pred_region
          %384 = dma.done %s377, 64
        $region56: #{xeus_encoder_forward.9} parent=43 // pred_fallthru
          _
        %s385 = sand.u32 %s35, 1
        %s386 = scalar_lea.sflag [#allocation11], %s385
        %s387 = sand.u32 %s139, 1
        %s388 = smul.addr %s387, 4
        %s389 = scalar_lea.vmem [#allocation10], %s388
        // Predicated region
        $region57: #{xeus_encoder_forward.9} parent=43 // pred_check
          %p390 = pneg %p152
        $region58: #{xeus_encoder_forward.9} parent=43 // pred_check_branch
          %392 = sbr.rel (%p390) target = $region60
        $region59: #{xeus_encoder_forward.9} parent=43 // pred_region
          %393 = dma.done %s386, 64
        $region60: #{xeus_encoder_forward.9} parent=43 // pred_fallthru
          _
        %s394 = sand.u32 %s35, 1
        %s395 = scalar_lea.sflag [#allocation11], %s394
        %s396 = sand.u32 %s165, 1
        %s397 = smul.addr %s396, 4
        %s398 = scalar_lea.vmem [#allocation12], %s397
        // Predicated region
        $region61: #{xeus_encoder_forward.9} parent=43 // pred_check
          %p399 = pneg %p178
        $region62: #{xeus_encoder_forward.9} parent=43 // pred_check_branch
          %401 = sbr.rel (%p399) target = $region64
        $region63: #{xeus_encoder_forward.9} parent=43 // pred_region
          %402 = dma.done %s395, 64
        $region64: #{xeus_encoder_forward.9} parent=43 // pred_fallthru
          _
        // Predicated region
        $region65: #{xeus_encoder_forward.9} parent=43 // pred_check
          %p403 = pneg %p199
        $region66: #{xeus_encoder_forward.9} parent=43 // pred_check_branch
          %405 = sbr.rel (%p403) target = $region68
        $region67: #{xeus_encoder_forward.9} parent=43 // pred_region
          %406 = dma.done [#allocation14], 16
        $region68: #{xeus_encoder_forward.9} parent=43 // pred_fallthru
          _
        %s407 = sand.u32 %s55, 1
        %s408 = scalar_lea.sflag [#allocation5], %s407
        %s409 = sand.u32 %s55, 1
        %s410 = smul.addr %s409, 8
        %s411 = scalar_lea.vmem [#allocation4], %s410
        %p412 = pneg %p68
        %p413 = pneg %p65
        %s414 = sand.u32 %s35, 1
        %s415 = scalar_lea.sflag [#allocation8], %s414
        %s416 = sand.u32 %s83, 1
        %s417 = smul.addr %s416, 4
        %s418 = scalar_lea.vmem [#allocation7], %s417
        %p419 = pneg %p96
        %p420 = pneg %p93
        %s421 = sand.u32 %s35, 1
        %s422 = scalar_lea.sflag [#allocation8], %s421
        %s423 = sand.u32 %s111, 1
        %s424 = smul.addr %s423, 4
        %s425 = scalar_lea.vmem [#allocation9], %s424
        %p426 = pneg %p124
        %p427 = pneg %p121
        %s428 = sand.u32 %s35, 1
        %s429 = scalar_lea.sflag [#allocation11], %s428
        %s430 = sand.u32 %s139, 1
        %s431 = smul.addr %s430, 4
        %s432 = scalar_lea.vmem [#allocation10], %s431
        %p433 = pneg %p152
        %p434 = pneg %p149
        %s435 = sand.u32 %s35, 1
        %s436 = scalar_lea.sflag [#allocation11], %s435
        %s437 = sand.u32 %s165, 1
        %s438 = smul.addr %s437, 4
        %s439 = scalar_lea.vmem [#allocation12], %s438
        %p440 = pneg %p178
        %p441 = pneg %p175
        %p442 = pneg %p199
        %p443 = pneg %p196
        %p444 = pneg %p225
        %p445 = pneg %p222
        %s446 = sand.u32 %s212, 1
        %s447 = scalar_lea.sflag [#allocation6], %s446
        %s448 = sand.u32 %s212, 1
        %s449 = smul.addr %s448, 8
        %s450 = scalar_lea.vmem [#allocation15], %s449
        %s452 = sld [smem:[#allocation3 + %s39]]
        %p453 = scmp.eq.s32.totalorder %s40, 0
        // Predicated region
        $region69: #{xeus_encoder_forward.9} parent=43 // pred_check
          %p454 = pneg %p453
        $region70: #{xeus_encoder_forward.9} parent=43 // pred_check_branch
          %456 = sbr.rel (%p454) target = $region72
        $region71: #{xeus_encoder_forward.9} parent=43 // pred_region
          %v457 = vld [vmem:[%s362] sm:$0xff]
          %v458 = vld [vmem:[#allocation13] sm:$0x1]
          %v460 = vlaneseq
          %v461 = vshrl.u32 %v460, 7
          %v462 = vsub.s32 0, %v461
          %v463 = vrot.slane %v458, %v462
          %v465 = vadd.f32 %v457, %v463
          %vm466 = vcmask 261120
          %467 = vst.msk [vmem:[%s450] sm:$0xff] %vm466, %v465
        $region72: #{xeus_encoder_forward.9} parent=43 // pred_fallthru
          _
        %v468 = vld [vmem:[%s371] sm:$0xf]
        %v469 = vunpack.c.l.bf16 %v468
        %v470 = vmul.f32 %v469, 0.35355338
        %v471 = vpack.c.bf16 %v470, %v470
        %v472 = vld [vmem:[%s380] sm:$0xf]
        %v473 = vld [vmem:[%s389] sm:$0xf]
        %v474 = vlaneseq
        %v475 = vand.u32 %v474, 127
        %v476 = vstv 0
        %v477 = vadd.s32 %v476, %v475
        %v478 = vstv %s452
        %vm479 = vcmp.lt.s32.totalorder %v477, %v478
        %v480 = vsel %vm479, 0.0, -1e+09
        %vm481 = vcmask 64512
        %v483 = vsel %vm481, %v471, 0
        %v486 = vsel %vm481, %v472, 0
        %488 = vmatprep.subr.bf16.mxu0 0
        %489 = vmatpush1.bf16.xpose.msra.mxu0 %v486
        %490 = vmatprep.subr.bf16.mxu0 0
        %491 = vmatpush1.bf16.xpose.msra.mxu0 0
        %492 = vmatprep.subr.bf16.mxu0 0
        %493 = vmatpush1.bf16.xpose.msra.mxu0 0
        %494 = vmatprep.subr.bf16.mxu0 0
        %495 = vmatpush1.bf16.xpose.msra.mxu0 0
        %496 = vmatprep.subr.bf16.mxu0 0
        %497 = vmatpush1.bf16.xpose.msra.mxu0 0
        %498 = vmatprep.subr.bf16.mxu0 0
        %499 = vmatpush1.bf16.xpose.msra.mxu0 0
        %500 = vmatprep.subr.bf16.mxu0 0
        %501 = vmatpush1.bf16.xpose.msra.mxu0 0
        %502 = vmatprep.subr.bf16.mxu0 0
        %503 = vmatpush1.bf16.xpose.msra.mxu0 0
        %504 = vmatprep.subr.bf16.mxu0 0
        %505 = vmatpush1.bf16.xpose.msra.mxu0 0
        %506 = vmatprep.subr.bf16.mxu0 0
        %507 = vmatpush1.bf16.xpose.msra.mxu0 0
        %508 = vmatprep.subr.bf16.mxu0 0
        %509 = vmatpush1.bf16.xpose.msra.mxu0 0
        %510 = vmatprep.subr.bf16.mxu0 0
        %511 = vmatpush1.bf16.xpose.msra.mxu0 0
        %512 = vmatprep.subr.bf16.mxu0 0
        %513 = vmatpush1.bf16.xpose.msra.mxu0 0
        %514 = vmatprep.subr.bf16.mxu0 0
        %515 = vmatpush1.bf16.xpose.msra.mxu0 0
        %516 = vmatprep.subr.bf16.mxu0 0
        %517 = vmatpush1.bf16.xpose.msra.mxu0 0
        %518 = vmatprep.subr.bf16.mxu0 0
        %519 = vmatpush1.bf16.xpose.msra.mxu0 0
        %520 = vmatprep.mubr.bf16.mxu0 0
        %521 = vmatmul.mubr.bf16.gmra.mrb[0].mxu0 %v483
        %v522 = vpop.f32.mrb[0].mxu0
        %v523 = vadd.f32 %v480, %v522
        %v524 = vpop.f32.mrb[0].mxu0
        %v525 = vpop.f32.mrb[0].mxu0
        %v526 = vpop.f32.mrb[0].mxu0
        %527 = vdwg.mxu0
        %v528 = vsel %vm481, %v523, -inf
        %529 = vmax.xlane.f32.xlu0 %v528
        %v530 = vpop.xlane.xlu0 %529
        %v531 = vsub.f32 -inf, %v530
        %v532 = vmul.f32 %v531, 1.442695
        %v533 = vpow.pop %v532
        %v534 = vsub.f32 %v523, %v530
        %v535 = vmul.f32 %v534, 1.442695
        %v536 = vpow.pop %v535
        %v537 = vmul.f32 %v533, 0.0
        %v538 = vsel %vm481, %v536, 0.0
        %539 = vadd.xlane.f32.xlu0 %v538
        %v540 = vpop.xlane.xlu0 %539
        %v541 = vadd.f32 %v537, %v540
        %v542 = vpack.c.bf16 %v536, %v536
        %v544 = vsel %vm481, %v542, 0
        %vm546 = vcmask 1043456
        %v548 = vsel %vm546, %v473, 0
        %550 = vmatprep.subr.bf16.mxu0 0
        %551 = vmatpush1.bf16.msra.mxu0 %v548
        %552 = vmatprep.subr.bf16.mxu0 0
        %553 = vmatpush1.bf16.msra.mxu0 0
        %554 = vmatprep.subr.bf16.mxu0 0
        %555 = vmatpush1.bf16.msra.mxu0 0
        %556 = vmatprep.subr.bf16.mxu0 0
        %557 = vmatpush1.bf16.msra.mxu0 0
        %558 = vmatprep.subr.bf16.mxu0 0
        %559 = vmatpush1.bf16.msra.mxu0 0
        %560 = vmatprep.subr.bf16.mxu0 0
        %561 = vmatpush1.bf16.msra.mxu0 0
        %562 = vmatprep.subr.bf16.mxu0 0
        %563 = vmatpush1.bf16.msra.mxu0 0
        %564 = vmatprep.subr.bf16.mxu0 0
        %565 = vmatpush1.bf16.msra.mxu0 0
        %566 = vmatprep.subr.bf16.mxu0 0
        %567 = vmatpush1.bf16.msra.mxu0 0
        %568 = vmatprep.subr.bf16.mxu0 0
        %569 = vmatpush1.bf16.msra.mxu0 0
        %570 = vmatprep.subr.bf16.mxu0 0
        %571 = vmatpush1.bf16.msra.mxu0 0
        %572 = vmatprep.subr.bf16.mxu0 0
        %573 = vmatpush1.bf16.msra.mxu0 0
        %574 = vmatprep.subr.bf16.mxu0 0
        %575 = vmatpush1.bf16.msra.mxu0 0
        %576 = vmatprep.subr.bf16.mxu0 0
        %577 = vmatpush1.bf16.msra.mxu0 0
        %578 = vmatprep.subr.bf16.mxu0 0
        %579 = vmatpush1.bf16.msra.mxu0 0
        %580 = vmatprep.subr.bf16.mxu0 0
        %581 = vmatpush1.bf16.msra.mxu0 0
        %582 = vmatprep.mubr.bf16.mxu0 0
        %583 = vmatmul.mubr.bf16.gmra.mrb[0].mxu0 %v544
        %v584 = vpop.f32.mrb[0].mxu0
        %v585 = vadd.f32 0.0, %v584
        %v586 = vpop.f32.mrb[0].mxu0
        %v587 = vpop.f32.mrb[0].mxu0
        %v588 = vpop.f32.mrb[0].mxu0
        %589 = vdwg.mxu0
        %v590 = vadd.f32 %v537, %v585
        %v591 = vrcp.pop %v541
        %v592 = vmul.f32 %v590, %v591
        %v593 = vld [vmem:[%s450] sm:$0xff]
        %v594 = vpack.c.bf16 %v592, %v592
        %v595 = vld [vmem:[%s398] sm:$0xf]
        %v597 = vsel %vm481, %v594, 0
        %v600 = vsel %vm546, %v595, 0
        %602 = vmatprep.subr.bf16.mxu0 0
        %603 = vmatpush1.bf16.msra.mxu0 %v600
        %604 = vmatprep.subr.bf16.mxu0 0
        %605 = vmatpush1.bf16.msra.mxu0 0
        %606 = vmatprep.subr.bf16.mxu0 0
        %607 = vmatpush1.bf16.msra.mxu0 0
        %608 = vmatprep.subr.bf16.mxu0 0
        %609 = vmatpush1.bf16.msra.mxu0 0
        %610 = vmatprep.subr.bf16.mxu0 0
        %611 = vmatpush1.bf16.msra.mxu0 0
        %612 = vmatprep.subr.bf16.mxu0 0
        %613 = vmatpush1.bf16.msra.mxu0 0
        %614 = vmatprep.subr.bf16.mxu0 0
        %615 = vmatpush1.bf16.msra.mxu0 0
        %616 = vmatprep.subr.bf16.mxu0 0
        %617 = vmatpush1.bf16.msra.mxu0 0
        %618 = vmatprep.subr.bf16.mxu0 0
        %619 = vmatpush1.bf16.msra.mxu0 0
        %620 = vmatprep.subr.bf16.mxu0 0
        %621 = vmatpush1.bf16.msra.mxu0 0
        %622 = vmatprep.subr.bf16.mxu0 0
        %623 = vmatpush1.bf16.msra.mxu0 0
        %624 = vmatprep.subr.bf16.mxu0 0
        %625 = vmatpush1.bf16.msra.mxu0 0
        %626 = vmatprep.subr.bf16.mxu0 0
        %627 = vmatpush1.bf16.msra.mxu0 0
        %628 = vmatprep.subr.bf16.mxu0 0
        %629 = vmatpush1.bf16.msra.mxu0 0
        %630 = vmatprep.subr.bf16.mxu0 0
        %631 = vmatpush1.bf16.msra.mxu0 0
        %632 = vmatprep.subr.bf16.mxu0 0
        %633 = vmatpush1.bf16.msra.mxu0 0
        %634 = vmatprep.mubr.bf16.mxu0 0
        %635 = vmatmul.mubr.bf16.gmra.mrb[0].mxu0 %v597
        %v636 = vpop.f32.mrb[0].mxu0
        %v637 = vadd.f32 0.0, %v636
        %v638 = vpop.f32.mrb[0].mxu0
        %v639 = vpop.f32.mrb[0].mxu0
        %v640 = vpop.f32.mrb[0].mxu0
        %641 = vdwg.mxu0
        %v642 = vadd.f32 %v593, %v637
        %vm643 = vcmask 261120
        %644 = vst.msk [vmem:[%s450] sm:$0xff] %vm643, %v642
        %s645 = sand.u32 %s212, 1
        %s646 = scalar_lea.sflag [#allocation6], %s645
        %s647 = sand.u32 %s212, 1
        %s648 = smul.addr %s647, 8
        %s649 = scalar_lea.vmem [#allocation15], %s648
        // Predicated region
        $region73: #{xeus_encoder_forward.9} parent=43 // pred_check
          %p650 = pneg %p222
        $region74: #{xeus_encoder_forward.9} parent=43 // pred_check_branch
          %652 = sbr.rel (%p650) target = $region76
        $region75: #{xeus_encoder_forward.9} parent=43 // pred_region
          %s654 = ssub.s32 128, 128
          %655 = vsyncadd %s646, %s654
          %s656 = smul.addr %s39, 128
          %s657 = scalar_lea.hbm %s7, %s656
          %s659 = sshll.u32 %s649, 4
          %s660 = int_to_ptr.vmem [resolvable:$true] %s659
          %662 = dma.vmem_to_hbm [thread:$0]  %s660, 128, %s657, %s646
        $region76: #{xeus_encoder_forward.9} parent=43 // pred_fallthru
          _
      $region44: #{xeus_encoder_forward.9} parent=5 // pred_fallthru
        _
      %p663 = scmp.le.s32.totalorder 2, %s30
      // Predicated region
      $region77: #{xeus_encoder_forward.9} parent=5 // pred_check
        %p664 = pneg %p663
      $region78: #{xeus_encoder_forward.9} parent=5 // pred_check_branch
        %666 = sbr.rel (%p664) target = $region80
      $region79: #{xeus_encoder_forward.9} parent=5 // pred_region
        %s667 = ssub.s32 %s30, 2
        // Predicated region
        $region81: #{xeus_encoder_forward.9} parent=79 // pred_check
          %p668 = pneg %p228
        $region82: #{xeus_encoder_forward.9} parent=79 // pred_check_branch
          %670 = sbr.rel (%p668) target = $region84
        $region83: #{xeus_encoder_forward.9} parent=79 // pred_region
          %s671 = sand.u32 %s213, 1
          %s672 = scalar_lea.sflag [#allocation6], %s671
          %s673 = sand.u32 %s213, 1
          %s674 = smul.addr %s673, 8
          %s675 = scalar_lea.vmem [#allocation15], %s674
          %676 = dma.done %s672, 128
        $region84: #{xeus_encoder_forward.9} parent=79 // pred_fallthru
          _
      $region80: #{xeus_encoder_forward.9} parent=5 // pred_fallthru
        _
    $region6: #{xeus_encoder_forward.9} parent=1 // loop_footer
      %s34 = sadd.s32 1, %s30
    $region7: #{xeus_encoder_forward.9} parent=1 // loop_footer_branch
      %29 = sbr.rel target = $region3
    $region8: #{xeus_encoder_forward.9} parent=1 // loop_exit
      _
    %677 = vsyncpa [#allocation5], 1
    %s678 = scalar_lea.sflag [#allocation5], 1
    %679 = vsyncpa %s678, 1
    %680 = vsyncpa [#allocation8], 1
    %s681 = scalar_lea.sflag [#allocation8], 1
    %682 = vsyncpa %s681, 1
    %683 = vsyncpa [#allocation11], 1
    %s684 = scalar_lea.sflag [#allocation11], 1
    %685 = vsyncpa %s684, 1
    %686 = vsyncpa [#allocation14], 1
    %687 = vsyncpa [#allocation6], 1
    %s688 = scalar_lea.sflag [#allocation6], 1
    %689 = vsyncpa %s688, 1

</llo_original>
